<compile_context>
chip_gen: v5e
topology: v5e:2x2
jax: 0.10.0
libtpu: 0.0.40
codegen_flags: <defaults>
</compile_context>

<pallas_src>
import functools

import jax
import jax.numpy as jnp
from jax.experimental import pallas as pl
from jax.experimental.pallas import tpu as pltpu


# ----------------------------------------------------------------------------
# Fused DownBlock kernel: one batch element per grid step.
# ----------------------------------------------------------------------------
def _down_block_kernel(p_ref, w0_ref, b0_ref, wr_ref, br_ref, gw_ref, gb_ref,
                       mask_ref, maskt_ref, o_ref, pad_ref,
                       *, eps, num_groups, ho, wo):
    # p_ref    : (1, Ho*Wo, 9*Cin) bf16   im2col patches of the stride-2 conv
    # w0_ref   : (9*Cin, Cout)     bf16   stride-2 conv weight, K = 9*Cin
    # b0_ref   : (1, Cout)         f32
    # wr_ref   : (2, 3, 3*Cout, Cout) bf16 residual weights, [stage, dw, 3 dh taps on K, out]
    # br_ref   : (2, 1, Cout)      f32    residual conv biases
    # gw_ref   : (2, 1, Cout)      f32    GroupNorm gamma
    # gb_ref   : (2, 1, Cout)      f32    GroupNorm beta
    # mask_ref : (Cout, G) f32 one-hot channel->group ; maskt_ref : (G, Cout)
    # o_ref    : (1, Ho*Wo, Cout)  f32    flattened (lane-dense at production Cout)
    # pad_ref  : VMEM (Ho+2, Wo+2, Cout) f32  padded activation for the 3x3 convs
    npix = ho * wo
    oc = o_ref.shape[2]
    n_stat = float(npix * (oc // num_groups))

    # ---- Downsample conv Conv2d(k=3, s=2, p=1): ONE bf16 GEMM, K = 9*Cin ----
    x = jnp.dot(p_ref[0], w0_ref[...], preferred_element_type=jnp.float32)
    x = x + b0_ref[...]                         # (npix, Cout) f32
    shortcut = x                                # stays in vregs / VMEM, no HBM trip

    # ---- zero only the 1-pixel halo, once per image (interior overwritten) ----
    pad_ref[0:1, :, :] = jnp.zeros((1, wo + 2, oc), jnp.float32)
    pad_ref[ho + 1:ho + 2, :, :] = jnp.zeros((1, wo + 2, oc), jnp.float32)
    pad_ref[:, 0:1, :] = jnp.zeros((ho + 2, 1, oc), jnp.float32)
    pad_ref[:, wo + 1:wo + 2, :] = jnp.zeros((ho + 2, 1, oc), jnp.float32)

    mask = mask_ref[...]
    maskt = maskt_ref[...]

    # ---- two residual stages: Conv3x3(same) -> GroupNorm -> SiLU ----
    for r in range(2):
        # current activation into the padded buffer interior (VMEM only)
        pad_ref[1:ho + 1, 1:wo + 1, :] = x.reshape(ho, wo, oc)

        # Conv3x3 as 3 GEMMs with K = 3*Cout (dh taps concatenated along K);
        # value-level accumulation -> single conceptual write, no per-tap RMW.
        acc = jnp.zeros((npix, oc), jnp.float32)
        for dw in range(3):
            slab = jnp.concatenate(
                [pad_ref[dh:dh + ho, dw:dw + wo, :] for dh in range(3)],
                axis=-1)                                        # (Ho, Wo, 3*Cout)
            acc = acc + jnp.dot(
                slab.reshape(npix, 3 * oc).astype(jnp.bfloat16),  # bf16 MXU operand
                wr_ref[r, dw],
                preferred_element_type=jnp.float32)
        acc = acc + br_ref[r]

        # GroupNorm (two-pass, f32): pixel reduction first, then the tiny
        # (1,Cout)x(Cout,G) group reduce -- no (npix,G) lane-sparse intermediate.
        sum_c = jnp.sum(acc, axis=0, keepdims=True)                       # (1, Cout)
        mean_c = jnp.dot(jnp.dot(sum_c, mask) * (1.0 / n_stat), maskt)    # (1, Cout)
        d = acc - mean_c
        ss_c = jnp.sum(d * d, axis=0, keepdims=True)                      # (1, Cout)
        var_g = jnp.dot(ss_c, mask) * (1.0 / n_stat)                      # (1, G)
        inv_c = jnp.dot(jax.lax.rsqrt(var_g + eps), maskt)                # (1, Cout)
        y = d * inv_c * gw_ref[r] + gb_ref[r]
        x = y * jax.nn.sigmoid(y)                                         # SiLU (f32)

    o_ref[...] = (x + shortcut).reshape(1, npix, oc)


# ----------------------------------------------------------------------------
# Glue: im2col + weight repacking (plain JAX, once) and the pallas_call wrapper.
# ----------------------------------------------------------------------------
def _pack_residual_weight(w):
    """(Cout, Cin, 3, 3) -> (3, 3*Cin, Cout), indexed by dw, dh-major along K."""
    cout, cin = w.shape[0], w.shape[1]
    whw = jnp.transpose(w, (2, 3, 1, 0))                 # (dh, dw, ci, co)
    return jnp.transpose(whw, (1, 0, 2, 3)).reshape(3, 3 * cin, cout)


def down_block_forward(x_nchw, params, num_groups, eps=1e-5):
    N, Cin, H, W = x_nchw.shape
    Cout = params["c0_w"].shape[0]
    assert Cout % num_groups == 0, "GroupNorm requires Cout % num_groups == 0"
    Ho, Wo = (H + 1) // 2, (W + 1) // 2
    npix = Ho * Wo

    # NCHW -> NHWC once (channels on lanes).
    x = jnp.transpose(x_nchw, (0, 2, 3, 1))

    # im2col of the stride-2 conv in glue: one dense GEMM with K = 9*Cin in-kernel,
    # no in-kernel shifted slices for the downsample.  Stored bf16 (halved HBM read).
    xp = jnp.pad(x, ((0, 0), (1, 1), (1, 1), (0, 0)))
    taps = []
    for dh in range(3):
        for dw in range(3):
            taps.append(xp[:, dh:dh + 2 * Ho:2, dw:dw + 2 * Wo:2, :])   # (N,Ho,Wo,Cin)
    patches = jnp.concatenate(taps, axis=-1).reshape(N, npix, 9 * Cin)
    patches = patches.astype(jnp.bfloat16)

    # Weight repacking (bf16 MXU operands); biases / GN params stay f32.
    w0 = jnp.transpose(params["c0_w"], (2, 3, 1, 0)).reshape(9 * Cin, Cout)
    w0 = w0.astype(jnp.bfloat16)
    b0 = params["c0_b"].reshape(1, Cout).astype(jnp.float32)
    wr = jnp.stack([_pack_residual_weight(params["c1_w"]),
                    _pack_residual_weight(params["c2_w"])]).astype(jnp.bfloat16)
    br = jnp.stack([params["c1_b"], params["c2_b"]]).reshape(2, 1, Cout).astype(jnp.float32)
    gw = jnp.stack([params["g1_w"], params["g2_w"]]).reshape(2, 1, Cout).astype(jnp.float32)
    gb = jnp.stack([params["g1_b"], params["g2_b"]]).reshape(2, 1, Cout).astype(jnp.float32)

    gids = jnp.arange(Cout) // (Cout // num_groups)
    mask = (gids[:, None] == jnp.arange(num_groups)[None, :]).astype(jnp.float32)
    maskt = mask.T

    kernel = functools.partial(_down_block_kernel, eps=eps, num_groups=num_groups,
                               ho=Ho, wo=Wo)

    out = pl.pallas_call(
        kernel,
        out_shape=jax.ShapeDtypeStruct((N, npix, Cout), jnp.float32),
        grid=(N,),
        in_specs=[
            pl.BlockSpec((1, npix, 9 * Cin), lambda n: (n, 0, 0)),
            pl.BlockSpec((9 * Cin, Cout), lambda n: (0, 0)),
            pl.BlockSpec((1, Cout), lambda n: (0, 0)),
            pl.BlockSpec((2, 3, 3 * Cout, Cout), lambda n: (0, 0, 0, 0)),
            pl.BlockSpec((2, 1, Cout), lambda n: (0, 0, 0)),
            pl.BlockSpec((2, 1, Cout), lambda n: (0, 0, 0)),
            pl.BlockSpec((2, 1, Cout), lambda n: (0, 0, 0)),
            pl.BlockSpec((Cout, num_groups), lambda n: (0, 0)),
            pl.BlockSpec((num_groups, Cout), lambda n: (0, 0)),
        ],
        out_specs=pl.BlockSpec((1, npix, Cout), lambda n: (n, 0, 0)),
        scratch_shapes=[
            pltpu.VMEM((Ho + 2, Wo + 2, Cout), jnp.float32),   # padded activation
        ],
        compiler_params=pltpu.CompilerParams(
            dimension_semantics=("parallel",),
            vmem_limit_bytes=48 * 1024 * 1024),
    )(patches, w0, b0, wr, br, gw, gb, mask, maskt)

    # spatial unflatten + NHWC -> NCHW in the wrapper (keeps the kernel store path clean)
    return jnp.transpose(out.reshape(N, Ho, Wo, Cout), (0, 3, 1, 2))


# ----------------------------------------------------------------------------
# Pure-JAX reference (lax convs).  matmul_dtype=bfloat16 emulates the kernel's
# bf16 MXU operands (f32 accumulation) for a tight numerical check.
# ----------------------------------------------------------------------------
def _gn_ref(x, gamma, beta, num_groups, eps=1e-5):
    N, H, W, C = x.shape
    xg = x.reshape(N, H * W, num_groups, C // num_groups)
    mu = jnp.mean(xg, axis=(1, 3), keepdims=True)
    var = jnp.mean((xg - mu) ** 2, axis=(1, 3), keepdims=True)
    xg = (xg - mu) * jax.lax.rsqrt(var + eps)
    x = xg.reshape(N, H, W, C)
    return x * gamma.reshape(1, 1, 1, C) + beta.reshape(1, 1, 1, C)


def ref_forward(x_nchw, p, num_groups, eps=1e-5, matmul_dtype=jnp.float32):
    cast = lambda a: a.astype(matmul_dtype).astype(jnp.float32)
    x = jnp.transpose(x_nchw, (0, 2, 3, 1))
    w = jnp.transpose(p["c0_w"], (2, 3, 1, 0))                   # HWIO
    y = jax.lax.conv_general_dilated(
        cast(x), cast(w), window_strides=(2, 2), padding=((1, 1), (1, 1)),
        dimension_numbers=("NHWC", "HWIO", "NHWC"),
        preferred_element_type=jnp.float32)
    y = y + p["c0_b"].reshape(1, 1, 1, -1)
    shortcut = y
    for i in (1, 2):
        w = jnp.transpose(p[f"c{i}_w"], (2, 3, 1, 0))
        y = jax.lax.conv_general_dilated(
            cast(y), cast(w), window_strides=(1, 1), padding=((1, 1), (1, 1)),
            dimension_numbers=("NHWC", "HWIO", "NHWC"),
            preferred_element_type=jnp.float32)
        y = y + p[f"c{i}_b"].reshape(1, 1, 1, -1)
        y = _gn_ref(y, p[f"g{i}_w"], p[f"g{i}_b"], num_groups, eps)
        y = y * jax.nn.sigmoid(y)
    y = y + shortcut
    return jnp.transpose(y, (0, 3, 1, 2))


if __name__ == "__main__":
    # DownBlock(in_chans=4, out_chans=8, num_groups=2, num_residuals=2)
    # input NCHW (2, 4, 16, 16) -> output (2, 8, 8, 8).
    N, Cin, H, W = 2, 4, 16, 16
    Cout, num_groups = 8, 2

    key = jax.random.PRNGKey(0)
    ks = jax.random.split(key, 11)
    params = {
        "c0_w": 0.2 * jax.random.normal(ks[0], (Cout, Cin, 3, 3), jnp.float32),
        "c0_b": 0.1 * jax.random.normal(ks[1], (Cout,), jnp.float32),
        "c1_w": 0.2 * jax.random.normal(ks[2], (Cout, Cout, 3, 3), jnp.float32),
        "c1_b": 0.1 * jax.random.normal(ks[3], (Cout,), jnp.float32),
        "g1_w": 1.0 + 0.1 * jax.random.normal(ks[4], (Cout,), jnp.float32),
        "g1_b": 0.1 * jax.random.normal(ks[5], (Cout,), jnp.float32),
        "c2_w": 0.2 * jax.random.normal(ks[6], (Cout, Cout, 3, 3), jnp.float32),
        "c2_b": 0.1 * jax.random.normal(ks[7], (Cout,), jnp.float32),
        "g2_w": 1.0 + 0.1 * jax.random.normal(ks[8], (Cout,), jnp.float32),
        "g2_b": 0.1 * jax.random.normal(ks[9], (Cout,), jnp.float32),
    }
    x = jax.random.normal(ks[10], (N, Cin, H, W), jnp.float32)

    fwd = jax.jit(down_block_forward, static_argnums=(2,))
    out = jax.block_until_ready(fwd(x, params, num_groups))

    assert out.shape == (N, Cout, H // 2, W // 2), out.shape

    # Tight check vs a reference that uses the same bf16 matmul operands / f32
    # accumulation as the kernel; loose check vs the exact f32 module (the only
    # difference is bf16 rounding of the conv operands).
    ref_bf16 = jax.block_until_ready(
        ref_forward(x, params, num_groups, matmul_dtype=jnp.bfloat16))
    ref_f32 = jax.block_until_ready(ref_forward(x, params, num_groups))
    err_bf16 = float(jnp.max(jnp.abs(out - ref_bf16)))
    err_f32 = float(jnp.max(jnp.abs(out - ref_f32)))
    assert err_bf16 < 2e-3, f"mismatch vs bf16-matmul reference: max_err={err_bf16}"
    assert err_f32 < 6e-2, f"mismatch vs f32 reference: max_err={err_f32}"
    print("KERNEL_OK")
</pallas_src>

<mosaic_0001>
module attributes {stable_mosaic.version = 11 : i64} {
  func.func @_down_block_kernel(%arg0: i32, %arg1: memref<1x64x36xbf16, #tpu.memory_space<vmem>>, %arg2: memref<36x8xbf16, #tpu.memory_space<vmem>>, %arg3: memref<1x8xf32, #tpu.memory_space<vmem>>, %arg4: memref<2x3x24x8xbf16, #tpu.memory_space<vmem>>, %arg5: memref<2x1x8xf32, #tpu.memory_space<vmem>>, %arg6: memref<2x1x8xf32, #tpu.memory_space<vmem>>, %arg7: memref<2x1x8xf32, #tpu.memory_space<vmem>>, %arg8: memref<8x2xf32, #tpu.memory_space<vmem>>, %arg9: memref<2x8xf32, #tpu.memory_space<vmem>>, %arg10: memref<1x64x8xf32, #tpu.memory_space<vmem>>, %arg11: memref<10x10x8xf32, #tpu.memory_space<vmem>>) attributes {dimension_semantics = [#tpu.dimension_semantics<parallel>], iteration_bounds = array<i64: 2>, scalar_prefetch = 0 : i64, scratch_operands = 1 : i64, tpu.core_type = #tpu.core_type<tc>, window_params = [{transform_indices = @transform_0, window_bounds = array<i64: 1, 64, 36>}, {pipeline_mode = #tpu.pipeline_mode<synchronous>, transform_indices = @transform_1, window_bounds = array<i64: 36, 8>}, {pipeline_mode = #tpu.pipeline_mode<synchronous>, transform_indices = @transform_2, window_bounds = array<i64: 1, 8>}, {pipeline_mode = #tpu.pipeline_mode<synchronous>, transform_indices = @transform_3, window_bounds = array<i64: 2, 3, 24, 8>}, {pipeline_mode = #tpu.pipeline_mode<synchronous>, transform_indices = @transform_4, window_bounds = array<i64: 2, 1, 8>}, {pipeline_mode = #tpu.pipeline_mode<synchronous>, transform_indices = @transform_5, window_bounds = array<i64: 2, 1, 8>}, {pipeline_mode = #tpu.pipeline_mode<synchronous>, transform_indices = @transform_6, window_bounds = array<i64: 2, 1, 8>}, {pipeline_mode = #tpu.pipeline_mode<synchronous>, transform_indices = @transform_7, window_bounds = array<i64: 8, 2>}, {pipeline_mode = #tpu.pipeline_mode<synchronous>, transform_indices = @transform_8, window_bounds = array<i64: 2, 8>}, {transform_indices = @transform_9, window_bounds = array<i64: 1, 64, 8>}]} {
    %c0 = arith.constant 0 : index
    %c0_0 = arith.constant 0 : index
    %c0_1 = arith.constant 0 : index
    %0 = vector.load %arg1[%c0, %c0_0, %c0_1] : memref<1x64x36xbf16, #tpu.memory_space<vmem>>, vector<1x64x36xbf16>
    %1 = vector.shape_cast %0 : vector<1x64x36xbf16> to vector<64x36xbf16>
    %c0_2 = arith.constant 0 : index
    %c0_3 = arith.constant 0 : index
    %2 = vector.load %arg2[%c0_2, %c0_3] : memref<36x8xbf16, #tpu.memory_space<vmem>>, vector<36x8xbf16>
    %cst = arith.constant dense<0.000000e+00> : vector<64x8xf32>
    %3 = tpu.matmul %1, %2, %cst {dimension_numbers = #tpu.dot_dimension_numbers<[1], [0], [0], [1], [0, 0, 1, 1], [], []>} : vector<64x36xbf16>, vector<36x8xbf16>, vector<64x8xf32> -> vector<64x8xf32>
    %c0_4 = arith.constant 0 : index
    %c0_5 = arith.constant 0 : index
    %4 = vector.load %arg3[%c0_4, %c0_5] : memref<1x8xf32, #tpu.memory_space<vmem>>, vector<1x8xf32>
    %5 = vector.broadcast %4 : vector<1x8xf32> to vector<64x8xf32>
    %6 = arith.addf %3, %5 : vector<64x8xf32>
    %cst_6 = arith.constant 0.000000e+00 : f32
    %7 = vector.broadcast %cst_6 : f32 to vector<1x10x8xf32>
    %c0_7 = arith.constant 0 : index
    %c0_8 = arith.constant 0 : index
    %c0_9 = arith.constant 0 : index
    %8 = vector.load %arg11[%c0_7, %c0_8, %c0_9] : memref<10x10x8xf32, #tpu.memory_space<vmem>>, vector<1x10x8xf32>
    tpu.vector_store %arg11[%c0_7, %c0_8, %c0_9], %7 {strides = array<i32>} : memref<10x10x8xf32, #tpu.memory_space<vmem>>, vector<1x10x8xf32>,
    %cst_10 = arith.constant 0.000000e+00 : f32
    %9 = vector.broadcast %cst_10 : f32 to vector<1x10x8xf32>
    %c9 = arith.constant 9 : index
    %c0_11 = arith.constant 0 : index
    %c0_12 = arith.constant 0 : index
    %10 = vector.load %arg11[%c9, %c0_11, %c0_12] : memref<10x10x8xf32, #tpu.memory_space<vmem>>, vector<1x10x8xf32>
    tpu.vector_store %arg11[%c9, %c0_11, %c0_12], %9 {strides = array<i32>} : memref<10x10x8xf32, #tpu.memory_space<vmem>>, vector<1x10x8xf32>,
    %cst_13 = arith.constant 0.000000e+00 : f32
    %11 = vector.broadcast %cst_13 : f32 to vector<10x1x8xf32>
    %c0_14 = arith.constant 0 : index
    %c0_15 = arith.constant 0 : index
    %c0_16 = arith.constant 0 : index
    %12 = vector.load %arg11[%c0_14, %c0_15, %c0_16] : memref<10x10x8xf32, #tpu.memory_space<vmem>>, vector<10x1x8xf32>
    tpu.vector_store %arg11[%c0_14, %c0_15, %c0_16], %11 {strides = array<i32>} : memref<10x10x8xf32, #tpu.memory_space<vmem>>, vector<10x1x8xf32>,
    %cst_17 = arith.constant 0.000000e+00 : f32
    %13 = vector.broadcast %cst_17 : f32 to vector<10x1x8xf32>
    %c0_18 = arith.constant 0 : index
    %c9_19 = arith.constant 9 : index
    %c0_20 = arith.constant 0 : index
    %14 = vector.load %arg11[%c0_18, %c9_19, %c0_20] : memref<10x10x8xf32, #tpu.memory_space<vmem>>, vector<10x1x8xf32>
    tpu.vector_store %arg11[%c0_18, %c9_19, %c0_20], %13 {strides = array<i32>} : memref<10x10x8xf32, #tpu.memory_space<vmem>>, vector<10x1x8xf32>,
    %c0_21 = arith.constant 0 : index
    %c0_22 = arith.constant 0 : index
    %15 = vector.load %arg8[%c0_21, %c0_22] : memref<8x2xf32, #tpu.memory_space<vmem>>, vector<8x2xf32>
    %c0_23 = arith.constant 0 : index
    %c0_24 = arith.constant 0 : index
    %16 = vector.load %arg9[%c0_23, %c0_24] : memref<2x8xf32, #tpu.memory_space<vmem>>, vector<2x8xf32>
    %17 = vector.shape_cast %6 : vector<64x8xf32> to vector<8x8x8xf32>
    %c1 = arith.constant 1 : index
    %c1_25 = arith.constant 1 : index
    %c0_26 = arith.constant 0 : index
    %18 = vector.load %arg11[%c1, %c1_25, %c0_26] : memref<10x10x8xf32, #tpu.memory_space<vmem>>, vector<8x8x8xf32>
    tpu.vector_store %arg11[%c1, %c1_25, %c0_26], %17 {strides = array<i32>} : memref<10x10x8xf32, #tpu.memory_space<vmem>>, vector<8x8x8xf32>,
    %cst_27 = arith.constant 0.000000e+00 : f32
    %19 = vector.broadcast %cst_27 : f32 to vector<64x8xf32>
    %c0_28 = arith.constant 0 : index
    %c0_29 = arith.constant 0 : index
    %c0_30 = arith.constant 0 : index
    %20 = vector.load %arg11[%c0_28, %c0_29, %c0_30] : memref<10x10x8xf32, #tpu.memory_space<vmem>>, vector<8x8x8xf32>
    %c1_31 = arith.constant 1 : index
    %c0_32 = arith.constant 0 : index
    %c0_33 = arith.constant 0 : index
    %21 = vector.load %arg11[%c1_31, %c0_32, %c0_33] : memref<10x10x8xf32, #tpu.memory_space<vmem>>, vector<8x8x8xf32>
    %c2 = arith.constant 2 : index
    %c0_34 = arith.constant 0 : index
    %c0_35 = arith.constant 0 : index
    %22 = vector.load %arg11[%c2, %c0_34, %c0_35] : memref<10x10x8xf32, #tpu.memory_space<vmem>>, vector<8x8x8xf32>
    %23 = tpu.concatenate %20, %21, %22 in 2 : vector<8x8x8xf32>, vector<8x8x8xf32>, vector<8x8x8xf32> -> vector<8x8x24xf32>
    %24 = vector.shape_cast %23 : vector<8x8x24xf32> to vector<64x24xf32>
    %25 = arith.truncf %24 : vector<64x24xf32> to vector<64x24xbf16>
    %c0_36 = arith.constant 0 : index
    %c0_37 = arith.constant 0 : index
    %c0_38 = arith.constant 0 : index
    %c0_39 = arith.constant 0 : index
    %26 = vector.load %arg4[%c0_36, %c0_37, %c0_38, %c0_39] : memref<2x3x24x8xbf16, #tpu.memory_space<vmem>>, vector<1x1x24x8xbf16>
    %27 = vector.shape_cast %26 : vector<1x1x24x8xbf16> to vector<24x8xbf16>
    %cst_40 = arith.constant dense<0.000000e+00> : vector<64x8xf32>
    %28 = tpu.matmul %25, %27, %cst_40 {dimension_numbers = #tpu.dot_dimension_numbers<[1], [0], [0], [1], [0, 0, 1, 1], [], []>} : vector<64x24xbf16>, vector<24x8xbf16>, vector<64x8xf32> -> vector<64x8xf32>
    %29 = arith.addf %19, %28 : vector<64x8xf32>
    %c0_41 = arith.constant 0 : index
    %c1_42 = arith.constant 1 : index
    %c0_43 = arith.constant 0 : index
    %30 = vector.load %arg11[%c0_41, %c1_42, %c0_43] : memref<10x10x8xf32, #tpu.memory_space<vmem>>, vector<8x8x8xf32>
    %c1_44 = arith.constant 1 : index
    %c1_45 = arith.constant 1 : index
    %c0_46 = arith.constant 0 : index
    %31 = vector.load %arg11[%c1_44, %c1_45, %c0_46] : memref<10x10x8xf32, #tpu.memory_space<vmem>>, vector<8x8x8xf32>
    %c2_47 = arith.constant 2 : index
    %c1_48 = arith.constant 1 : index
    %c0_49 = arith.constant 0 : index
    %32 = vector.load %arg11[%c2_47, %c1_48, %c0_49] : memref<10x10x8xf32, #tpu.memory_space<vmem>>, vector<8x8x8xf32>
    %33 = tpu.concatenate %30, %31, %32 in 2 : vector<8x8x8xf32>, vector<8x8x8xf32>, vector<8x8x8xf32> -> vector<8x8x24xf32>
    %34 = vector.shape_cast %33 : vector<8x8x24xf32> to vector<64x24xf32>
    %35 = arith.truncf %34 : vector<64x24xf32> to vector<64x24xbf16>
    %c0_50 = arith.constant 0 : index
    %c1_51 = arith.constant 1 : index
    %c0_52 = arith.constant 0 : index
    %c0_53 = arith.constant 0 : index
    %36 = vector.load %arg4[%c0_50, %c1_51, %c0_52, %c0_53] : memref<2x3x24x8xbf16, #tpu.memory_space<vmem>>, vector<1x1x24x8xbf16>
    %37 = vector.shape_cast %36 : vector<1x1x24x8xbf16> to vector<24x8xbf16>
    %cst_54 = arith.constant dense<0.000000e+00> : vector<64x8xf32>
    %38 = tpu.matmul %35, %37, %cst_54 {dimension_numbers = #tpu.dot_dimension_numbers<[1], [0], [0], [1], [0, 0, 1, 1], [], []>} : vector<64x24xbf16>, vector<24x8xbf16>, vector<64x8xf32> -> vector<64x8xf32>
    %39 = arith.addf %29, %38 : vector<64x8xf32>
    %c0_55 = arith.constant 0 : index
    %c2_56 = arith.constant 2 : index
    %c0_57 = arith.constant 0 : index
    %40 = vector.load %arg11[%c0_55, %c2_56, %c0_57] : memref<10x10x8xf32, #tpu.memory_space<vmem>>, vector<8x8x8xf32>
    %c1_58 = arith.constant 1 : index
    %c2_59 = arith.constant 2 : index
    %c0_60 = arith.constant 0 : index
    %41 = vector.load %arg11[%c1_58, %c2_59, %c0_60] : memref<10x10x8xf32, #tpu.memory_space<vmem>>, vector<8x8x8xf32>
    %c2_61 = arith.constant 2 : index
    %c2_62 = arith.constant 2 : index
    %c0_63 = arith.constant 0 : index
    %42 = vector.load %arg11[%c2_61, %c2_62, %c0_63] : memref<10x10x8xf32, #tpu.memory_space<vmem>>, vector<8x8x8xf32>
    %43 = tpu.concatenate %40, %41, %42 in 2 : vector<8x8x8xf32>, vector<8x8x8xf32>, vector<8x8x8xf32> -> vector<8x8x24xf32>
    %44 = vector.shape_cast %43 : vector<8x8x24xf32> to vector<64x24xf32>
    %45 = arith.truncf %44 : vector<64x24xf32> to vector<64x24xbf16>
    %c0_64 = arith.constant 0 : index
    %c2_65 = arith.constant 2 : index
    %c0_66 = arith.constant 0 : index
    %c0_67 = arith.constant 0 : index
    %46 = vector.load %arg4[%c0_64, %c2_65, %c0_66, %c0_67] : memref<2x3x24x8xbf16, #tpu.memory_space<vmem>>, vector<1x1x24x8xbf16>
    %47 = vector.shape_cast %46 : vector<1x1x24x8xbf16> to vector<24x8xbf16>
    %cst_68 = arith.constant dense<0.000000e+00> : vector<64x8xf32>
    %48 = tpu.matmul %45, %47, %cst_68 {dimension_numbers = #tpu.dot_dimension_numbers<[1], [0], [0], [1], [0, 0, 1, 1], [], []>} : vector<64x24xbf16>, vector<24x8xbf16>, vector<64x8xf32> -> vector<64x8xf32>
    %49 = arith.addf %39, %48 : vector<64x8xf32>
    %c0_69 = arith.constant 0 : index
    %c0_70 = arith.constant 0 : index
    %c0_71 = arith.constant 0 : index
    %50 = vector.load %arg5[%c0_69, %c0_70, %c0_71] : memref<2x1x8xf32, #tpu.memory_space<vmem>>, vector<1x1x8xf32>
    %51 = vector.shape_cast %50 : vector<1x1x8xf32> to vector<1x8xf32>
    %52 = vector.broadcast %51 : vector<1x8xf32> to vector<64x8xf32>
    %53 = arith.addf %49, %52 : vector<64x8xf32>
    %cst_72 = arith.constant dense<0.000000e+00> : vector<8xf32>
    %54 = vector.multi_reduction <add>, %53, %cst_72 [0] : vector<64x8xf32> to vector<8xf32>
    %55 = vector.shape_cast %54 : vector<8xf32> to vector<1x8xf32>
    %cst_73 = arith.constant dense<0.000000e+00> : vector<1x2xf32>
    %56 = tpu.matmul %55, %15, %cst_73 {dimension_numbers = #tpu.dot_dimension_numbers<[1], [0], [0], [1], [0, 0, 1, 1], [], []>} : vector<1x8xf32>, vector<8x2xf32>, vector<1x2xf32> -> vector<1x2xf32>
    %cst_74 = arith.constant 3.906250e-03 : f32
    %57 = vector.broadcast %cst_74 : f32 to vector<1x2xf32>
    %58 = arith.mulf %56, %57 : vector<1x2xf32>
    %cst_75 = arith.constant dense<0.000000e+00> : vector<1x8xf32>
    %59 = tpu.matmul %58, %16, %cst_75 {dimension_numbers = #tpu.dot_dimension_numbers<[1], [0], [0], [1], [0, 0, 1, 1], [], []>} : vector<1x2xf32>, vector<2x8xf32>, vector<1x8xf32> -> vector<1x8xf32>
    %60 = vector.broadcast %59 : vector<1x8xf32> to vector<64x8xf32>
    %61 = arith.subf %53, %60 : vector<64x8xf32>
    %62 = arith.mulf %61, %61 : vector<64x8xf32>
    %cst_76 = arith.constant dense<0.000000e+00> : vector<8xf32>
    %63 = vector.multi_reduction <add>, %62, %cst_76 [0] : vector<64x8xf32> to vector<8xf32>
    %64 = vector.shape_cast %63 : vector<8xf32> to vector<1x8xf32>
    %cst_77 = arith.constant dense<0.000000e+00> : vector<1x2xf32>
    %65 = tpu.matmul %64, %15, %cst_77 {dimension_numbers = #tpu.dot_dimension_numbers<[1], [0], [0], [1], [0, 0, 1, 1], [], []>} : vector<1x8xf32>, vector<8x2xf32>, vector<1x2xf32> -> vector<1x2xf32>
    %cst_78 = arith.constant 3.906250e-03 : f32
    %66 = vector.broadcast %cst_78 : f32 to vector<1x2xf32>
    %67 = arith.mulf %65, %66 : vector<1x2xf32>
    %cst_79 = arith.constant 9.99999974E-6 : f32
    %68 = vector.broadcast %cst_79 : f32 to vector<1x2xf32>
    %69 = arith.addf %67, %68 : vector<1x2xf32>
    %70 = math.rsqrt %69 : vector<1x2xf32>
    %cst_80 = arith.constant dense<0.000000e+00> : vector<1x8xf32>
    %71 = tpu.matmul %70, %16, %cst_80 {dimension_numbers = #tpu.dot_dimension_numbers<[1], [0], [0], [1], [0, 0, 1, 1], [], []>} : vector<1x2xf32>, vector<2x8xf32>, vector<1x8xf32> -> vector<1x8xf32>
    %72 = vector.broadcast %71 : vector<1x8xf32> to vector<64x8xf32>
    %73 = arith.mulf %61, %72 : vector<64x8xf32>
    %c0_81 = arith.constant 0 : index
    %c0_82 = arith.constant 0 : index
    %c0_83 = arith.constant 0 : index
    %74 = vector.load %arg6[%c0_81, %c0_82, %c0_83] : memref<2x1x8xf32, #tpu.memory_space<vmem>>, vector<1x1x8xf32>
    %75 = vector.shape_cast %74 : vector<1x1x8xf32> to vector<1x8xf32>
    %76 = vector.broadcast %75 : vector<1x8xf32> to vector<64x8xf32>
    %77 = arith.mulf %73, %76 : vector<64x8xf32>
    %c0_84 = arith.constant 0 : index
    %c0_85 = arith.constant 0 : index
    %c0_86 = arith.constant 0 : index
    %78 = vector.load %arg7[%c0_84, %c0_85, %c0_86] : memref<2x1x8xf32, #tpu.memory_space<vmem>>, vector<1x1x8xf32>
    %79 = vector.shape_cast %78 : vector<1x1x8xf32> to vector<1x8xf32>
    %80 = vector.broadcast %79 : vector<1x8xf32> to vector<64x8xf32>
    %81 = arith.addf %77, %80 : vector<64x8xf32>
    %82 = arith.negf %81 : vector<64x8xf32>
    %83 = math.exp %82 : vector<64x8xf32>
    %cst_87 = arith.constant 1.000000e+00 : f32
    %84 = vector.broadcast %cst_87 : f32 to vector<64x8xf32>
    %85 = arith.addf %84, %83 : vector<64x8xf32>
    %86 = arith.divf %84, %85 : vector<64x8xf32>
    %87 = arith.mulf %81, %86 : vector<64x8xf32>
    %88 = vector.shape_cast %87 : vector<64x8xf32> to vector<8x8x8xf32>
    %c1_88 = arith.constant 1 : index
    %c1_89 = arith.constant 1 : index
    %c0_90 = arith.constant 0 : index
    %89 = vector.load %arg11[%c1_88, %c1_89, %c0_90] : memref<10x10x8xf32, #tpu.memory_space<vmem>>, vector<8x8x8xf32>
    tpu.vector_store %arg11[%c1_88, %c1_89, %c0_90], %88 {strides = array<i32>} : memref<10x10x8xf32, #tpu.memory_space<vmem>>, vector<8x8x8xf32>,
    %cst_91 = arith.constant 0.000000e+00 : f32
    %90 = vector.broadcast %cst_91 : f32 to vector<64x8xf32>
    %c0_92 = arith.constant 0 : index
    %c0_93 = arith.constant 0 : index
    %c0_94 = arith.constant 0 : index
    %91 = vector.load %arg11[%c0_92, %c0_93, %c0_94] : memref<10x10x8xf32, #tpu.memory_space<vmem>>, vector<8x8x8xf32>
    %c1_95 = arith.constant 1 : index
    %c0_96 = arith.constant 0 : index
    %c0_97 = arith.constant 0 : index
    %92 = vector.load %arg11[%c1_95, %c0_96, %c0_97] : memref<10x10x8xf32, #tpu.memory_space<vmem>>, vector<8x8x8xf32>
    %c2_98 = arith.constant 2 : index
    %c0_99 = arith.constant 0 : index
    %c0_100 = arith.constant 0 : index
    %93 = vector.load %arg11[%c2_98, %c0_99, %c0_100] : memref<10x10x8xf32, #tpu.memory_space<vmem>>, vector<8x8x8xf32>
    %94 = tpu.concatenate %91, %92, %93 in 2 : vector<8x8x8xf32>, vector<8x8x8xf32>, vector<8x8x8xf32> -> vector<8x8x24xf32>
    %95 = vector.shape_cast %94 : vector<8x8x24xf32> to vector<64x24xf32>
    %96 = arith.truncf %95 : vector<64x24xf32> to vector<64x24xbf16>
    %c1_101 = arith.constant 1 : index
    %c0_102 = arith.constant 0 : index
    %c0_103 = arith.constant 0 : index
    %c0_104 = arith.constant 0 : index
    %97 = vector.load %arg4[%c1_101, %c0_102, %c0_103, %c0_104] : memref<2x3x24x8xbf16, #tpu.memory_space<vmem>>, vector<1x1x24x8xbf16>
    %98 = vector.shape_cast %97 : vector<1x1x24x8xbf16> to vector<24x8xbf16>
    %cst_105 = arith.constant dense<0.000000e+00> : vector<64x8xf32>
    %99 = tpu.matmul %96, %98, %cst_105 {dimension_numbers = #tpu.dot_dimension_numbers<[1], [0], [0], [1], [0, 0, 1, 1], [], []>} : vector<64x24xbf16>, vector<24x8xbf16>, vector<64x8xf32> -> vector<64x8xf32>
    %100 = arith.addf %90, %99 : vector<64x8xf32>
    %c0_106 = arith.constant 0 : index
    %c1_107 = arith.constant 1 : index
    %c0_108 = arith.constant 0 : index
    %101 = vector.load %arg11[%c0_106, %c1_107, %c0_108] : memref<10x10x8xf32, #tpu.memory_space<vmem>>, vector<8x8x8xf32>
    %c1_109 = arith.constant 1 : index
    %c1_110 = arith.constant 1 : index
    %c0_111 = arith.constant 0 : index
    %102 = vector.load %arg11[%c1_109, %c1_110, %c0_111] : memref<10x10x8xf32, #tpu.memory_space<vmem>>, vector<8x8x8xf32>
    %c2_112 = arith.constant 2 : index
    %c1_113 = arith.constant 1 : index
    %c0_114 = arith.constant 0 : index
    %103 = vector.load %arg11[%c2_112, %c1_113, %c0_114] : memref<10x10x8xf32, #tpu.memory_space<vmem>>, vector<8x8x8xf32>
    %104 = tpu.concatenate %101, %102, %103 in 2 : vector<8x8x8xf32>, vector<8x8x8xf32>, vector<8x8x8xf32> -> vector<8x8x24xf32>
    %105 = vector.shape_cast %104 : vector<8x8x24xf32> to vector<64x24xf32>
    %106 = arith.truncf %105 : vector<64x24xf32> to vector<64x24xbf16>
    %c1_115 = arith.constant 1 : index
    %c1_116 = arith.constant 1 : index
    %c0_117 = arith.constant 0 : index
    %c0_118 = arith.constant 0 : index
    %107 = vector.load %arg4[%c1_115, %c1_116, %c0_117, %c0_118] : memref<2x3x24x8xbf16, #tpu.memory_space<vmem>>, vector<1x1x24x8xbf16>
    %108 = vector.shape_cast %107 : vector<1x1x24x8xbf16> to vector<24x8xbf16>
    %cst_119 = arith.constant dense<0.000000e+00> : vector<64x8xf32>
    %109 = tpu.matmul %106, %108, %cst_119 {dimension_numbers = #tpu.dot_dimension_numbers<[1], [0], [0], [1], [0, 0, 1, 1], [], []>} : vector<64x24xbf16>, vector<24x8xbf16>, vector<64x8xf32> -> vector<64x8xf32>
    %110 = arith.addf %100, %109 : vector<64x8xf32>
    %c0_120 = arith.constant 0 : index
    %c2_121 = arith.constant 2 : index
    %c0_122 = arith.constant 0 : index
    %111 = vector.load %arg11[%c0_120, %c2_121, %c0_122] : memref<10x10x8xf32, #tpu.memory_space<vmem>>, vector<8x8x8xf32>
    %c1_123 = arith.constant 1 : index
    %c2_124 = arith.constant 2 : index
    %c0_125 = arith.constant 0 : index
    %112 = vector.load %arg11[%c1_123, %c2_124, %c0_125] : memref<10x10x8xf32, #tpu.memory_space<vmem>>, vector<8x8x8xf32>
    %c2_126 = arith.constant 2 : index
    %c2_127 = arith.constant 2 : index
    %c0_128 = arith.constant 0 : index
    %113 = vector.load %arg11[%c2_126, %c2_127, %c0_128] : memref<10x10x8xf32, #tpu.memory_space<vmem>>, vector<8x8x8xf32>
    %114 = tpu.concatenate %111, %112, %113 in 2 : vector<8x8x8xf32>, vector<8x8x8xf32>, vector<8x8x8xf32> -> vector<8x8x24xf32>
    %115 = vector.shape_cast %114 : vector<8x8x24xf32> to vector<64x24xf32>
    %116 = arith.truncf %115 : vector<64x24xf32> to vector<64x24xbf16>
    %c1_129 = arith.constant 1 : index
    %c2_130 = arith.constant 2 : index
    %c0_131 = arith.constant 0 : index
    %c0_132 = arith.constant 0 : index
    %117 = vector.load %arg4[%c1_129, %c2_130, %c0_131, %c0_132] : memref<2x3x24x8xbf16, #tpu.memory_space<vmem>>, vector<1x1x24x8xbf16>
    %118 = vector.shape_cast %117 : vector<1x1x24x8xbf16> to vector<24x8xbf16>
    %cst_133 = arith.constant dense<0.000000e+00> : vector<64x8xf32>
    %119 = tpu.matmul %116, %118, %cst_133 {dimension_numbers = #tpu.dot_dimension_numbers<[1], [0], [0], [1], [0, 0, 1, 1], [], []>} : vector<64x24xbf16>, vector<24x8xbf16>, vector<64x8xf32> -> vector<64x8xf32>
    %120 = arith.addf %110, %119 : vector<64x8xf32>
    %c1_134 = arith.constant 1 : index
    %c0_135 = arith.constant 0 : index
    %c0_136 = arith.constant 0 : index
    %121 = vector.load %arg5[%c1_134, %c0_135, %c0_136] : memref<2x1x8xf32, #tpu.memory_space<vmem>>, vector<1x1x8xf32>
    %122 = vector.shape_cast %121 : vector<1x1x8xf32> to vector<1x8xf32>
    %123 = vector.broadcast %122 : vector<1x8xf32> to vector<64x8xf32>
    %124 = arith.addf %120, %123 : vector<64x8xf32>
    %cst_137 = arith.constant dense<0.000000e+00> : vector<8xf32>
    %125 = vector.multi_reduction <add>, %124, %cst_137 [0] : vector<64x8xf32> to vector<8xf32>
    %126 = vector.shape_cast %125 : vector<8xf32> to vector<1x8xf32>
    %cst_138 = arith.constant dense<0.000000e+00> : vector<1x2xf32>
    %127 = tpu.matmul %126, %15, %cst_138 {dimension_numbers = #tpu.dot_dimension_numbers<[1], [0], [0], [1], [0, 0, 1, 1], [], []>} : vector<1x8xf32>, vector<8x2xf32>, vector<1x2xf32> -> vector<1x2xf32>
    %cst_139 = arith.constant 3.906250e-03 : f32
    %128 = vector.broadcast %cst_139 : f32 to vector<1x2xf32>
    %129 = arith.mulf %127, %128 : vector<1x2xf32>
    %cst_140 = arith.constant dense<0.000000e+00> : vector<1x8xf32>
    %130 = tpu.matmul %129, %16, %cst_140 {dimension_numbers = #tpu.dot_dimension_numbers<[1], [0], [0], [1], [0, 0, 1, 1], [], []>} : vector<1x2xf32>, vector<2x8xf32>, vector<1x8xf32> -> vector<1x8xf32>
    %131 = vector.broadcast %130 : vector<1x8xf32> to vector<64x8xf32>
    %132 = arith.subf %124, %131 : vector<64x8xf32>
    %133 = arith.mulf %132, %132 : vector<64x8xf32>
    %cst_141 = arith.constant dense<0.000000e+00> : vector<8xf32>
    %134 = vector.multi_reduction <add>, %133, %cst_141 [0] : vector<64x8xf32> to vector<8xf32>
    %135 = vector.shape_cast %134 : vector<8xf32> to vector<1x8xf32>
    %cst_142 = arith.constant dense<0.000000e+00> : vector<1x2xf32>
    %136 = tpu.matmul %135, %15, %cst_142 {dimension_numbers = #tpu.dot_dimension_numbers<[1], [0], [0], [1], [0, 0, 1, 1], [], []>} : vector<1x8xf32>, vector<8x2xf32>, vector<1x2xf32> -> vector<1x2xf32>
    %cst_143 = arith.constant 3.906250e-03 : f32
    %137 = vector.broadcast %cst_143 : f32 to vector<1x2xf32>
    %138 = arith.mulf %136, %137 : vector<1x2xf32>
    %cst_144 = arith.constant 9.99999974E-6 : f32
    %139 = vector.broadcast %cst_144 : f32 to vector<1x2xf32>
    %140 = arith.addf %138, %139 : vector<1x2xf32>
    %141 = math.rsqrt %140 : vector<1x2xf32>
    %cst_145 = arith.constant dense<0.000000e+00> : vector<1x8xf32>
    %142 = tpu.matmul %141, %16, %cst_145 {dimension_numbers = #tpu.dot_dimension_numbers<[1], [0], [0], [1], [0, 0, 1, 1], [], []>} : vector<1x2xf32>, vector<2x8xf32>, vector<1x8xf32> -> vector<1x8xf32>
    %143 = vector.broadcast %142 : vector<1x8xf32> to vector<64x8xf32>
    %144 = arith.mulf %132, %143 : vector<64x8xf32>
    %c1_146 = arith.constant 1 : index
    %c0_147 = arith.constant 0 : index
    %c0_148 = arith.constant 0 : index
    %145 = vector.load %arg6[%c1_146, %c0_147, %c0_148] : memref<2x1x8xf32, #tpu.memory_space<vmem>>, vector<1x1x8xf32>
    %146 = vector.shape_cast %145 : vector<1x1x8xf32> to vector<1x8xf32>
    %147 = vector.broadcast %146 : vector<1x8xf32> to vector<64x8xf32>
    %148 = arith.mulf %144, %147 : vector<64x8xf32>
    %c1_149 = arith.constant 1 : index
    %c0_150 = arith.constant 0 : index
    %c0_151 = arith.constant 0 : index
    %149 = vector.load %arg7[%c1_149, %c0_150, %c0_151] : memref<2x1x8xf32, #tpu.memory_space<vmem>>, vector<1x1x8xf32>
    %150 = vector.shape_cast %149 : vector<1x1x8xf32> to vector<1x8xf32>
    %151 = vector.broadcast %150 : vector<1x8xf32> to vector<64x8xf32>
    %152 = arith.addf %148, %151 : vector<64x8xf32>
    %153 = arith.negf %152 : vector<64x8xf32>
    %154 = math.exp %153 : vector<64x8xf32>
    %cst_152 = arith.constant 1.000000e+00 : f32
    %155 = vector.broadcast %cst_152 : f32 to vector<64x8xf32>
    %156 = arith.addf %155, %154 : vector<64x8xf32>
    %157 = arith.divf %155, %156 : vector<64x8xf32>
    %158 = arith.mulf %152, %157 : vector<64x8xf32>
    %159 = arith.addf %158, %6 : vector<64x8xf32>
    %160 = vector.shape_cast %159 : vector<64x8xf32> to vector<1x64x8xf32>
    %c0_153 = arith.constant 0 : index
    %c0_154 = arith.constant 0 : index
    %c0_155 = arith.constant 0 : index
    %161 = vector.load %arg10[%c0_153, %c0_154, %c0_155] : memref<1x64x8xf32, #tpu.memory_space<vmem>>, vector<1x64x8xf32>
    tpu.vector_store %arg10[%c0_153, %c0_154, %c0_155], %160 {strides = array<i32>} : memref<1x64x8xf32, #tpu.memory_space<vmem>>, vector<1x64x8xf32>,
    return
  }
  func.func @transform_0(%arg0: i32) -> (i32, i32, i32) {
    %c0_i32 = arith.constant 0 : i32
    %c0_i32_0 = arith.constant 0 : i32
    %c0_i32_1 = arith.constant 0 : i32
    return %arg0, %c0_i32, %c0_i32_0 : i32, i32, i32
  }
  func.func @transform_1(%arg0: i32) -> (i32, i32) {
    %c0_i32 = arith.constant 0 : i32
    %c0_i32_0 = arith.constant 0 : i32
    %c0_i32_1 = arith.constant 0 : i32
    return %c0_i32, %c0_i32_0 : i32, i32
  }
  func.func @transform_2(%arg0: i32) -> (i32, i32) {
    %c0_i32 = arith.constant 0 : i32
    %c0_i32_0 = arith.constant 0 : i32
    %c0_i32_1 = arith.constant 0 : i32
    return %c0_i32, %c0_i32_0 : i32, i32
  }
  func.func @transform_3(%arg0: i32) -> (i32, i32, i32, i32) {
    %c0_i32 = arith.constant 0 : i32
    %c0_i32_0 = arith.constant 0 : i32
    %c0_i32_1 = arith.constant 0 : i32
    %c0_i32_2 = arith.constant 0 : i32
    %c0_i32_3 = arith.constant 0 : i32
    return %c0_i32, %c0_i32_0, %c0_i32_1, %c0_i32_2 : i32, i32, i32, i32
  }
  func.func @transform_4(%arg0: i32) -> (i32, i32, i32) {
    %c0_i32 = arith.constant 0 : i32
    %c0_i32_0 = arith.constant 0 : i32
    %c0_i32_1 = arith.constant 0 : i32
    %c0_i32_2 = arith.constant 0 : i32
    return %c0_i32, %c0_i32_0, %c0_i32_1 : i32, i32, i32
  }
  func.func @transform_5(%arg0: i32) -> (i32, i32, i32) {
    %c0_i32 = arith.constant 0 : i32
    %c0_i32_0 = arith.constant 0 : i32
    %c0_i32_1 = arith.constant 0 : i32
    %c0_i32_2 = arith.constant 0 : i32
    return %c0_i32, %c0_i32_0, %c0_i32_1 : i32, i32, i32
  }
  func.func @transform_6(%arg0: i32) -> (i32, i32, i32) {
    %c0_i32 = arith.constant 0 : i32
    %c0_i32_0 = arith.constant 0 : i32
    %c0_i32_1 = arith.constant 0 : i32
    %c0_i32_2 = arith.constant 0 : i32
    return %c0_i32, %c0_i32_0, %c0_i32_1 : i32, i32, i32
  }
  func.func @transform_7(%arg0: i32) -> (i32, i32) {
    %c0_i32 = arith.constant 0 : i32
    %c0_i32_0 = arith.constant 0 : i32
    %c0_i32_1 = arith.constant 0 : i32
    return %c0_i32, %c0_i32_0 : i32, i32
  }
  func.func @transform_8(%arg0: i32) -> (i32, i32) {
    %c0_i32 = arith.constant 0 : i32
    %c0_i32_0 = arith.constant 0 : i32
    %c0_i32_1 = arith.constant 0 : i32
    return %c0_i32, %c0_i32_0 : i32, i32
  }
  func.func @transform_9(%arg0: i32) -> (i32, i32, i32) {
    %c0_i32 = arith.constant 0 : i32
    %c0_i32_0 = arith.constant 0 : i32
    %c0_i32_1 = arith.constant 0 : i32
    return %arg0, %c0_i32, %c0_i32_0 : i32, i32, i32
  }
}

</mosaic_0001>

<llo_original>
// kernel: down_block_forward.1
$region0: #{down_block_forward.1}
  #allocation0 [shape = 'u32[]', space=smem, size = 0x4, offset = 0x4, fixed_abs, tag = 'smem constant byte address 0x4 - core index']
  #allocation1 [shape = 'u32[72,128]{1,0:T(1,128)}', space=vmem, size = 0x9000, scoped, tag = 'internal scratch']
  #allocation2 [shape = 'f32[10,10,8]{2,1,0:T(8,128)}', space=vmem, size = 0x14000, scoped, tag = 'scratch operand']
  %s0 = inlined_call_operand.vmem [shape: bf16[2,64,36], index: 0, kind: input, shape index: {}]
  %s1 = inlined_call_operand.vmem [shape: bf16[36,8], index: 1, kind: input, shape index: {}]
  %s2 = inlined_call_operand.vmem [shape: f32[1,8], index: 2, kind: input, shape index: {}]
  %s3 = inlined_call_operand.vmem [shape: bf16[2,3,24,8], index: 3, kind: input, shape index: {}]
  %s4 = inlined_call_operand.vmem [shape: f32[2,1,8], index: 4, kind: input, shape index: {}]
  %s5 = inlined_call_operand.vmem [shape: f32[2,1,8], index: 5, kind: input, shape index: {}]
  %s6 = inlined_call_operand.vmem [shape: f32[2,1,8], index: 6, kind: input, shape index: {}]
  %s7 = inlined_call_operand.vmem [shape: f32[8,2], index: 7, kind: input, shape index: {}]
  %s8 = inlined_call_operand.vmem [shape: f32[2,8], index: 8, kind: input, shape index: {}]
  %s9 = inlined_call_operand.vmem [shape: f32[2,64,8], index: 9, kind: output, shape index: {}]
  %s10 = sld [smem:[#allocation0]]
  $region69: #{down_block_forward.1} parent=0
    _
  %s12 = ssub.s32 1, %s10
  %s13 = scalar_select 0, %s12, %s10
  loop: start=0, step=1, limit=4
  $region2: #{down_block_forward.1} parent=0 // loop_pre_header
    _
  $region3: #{down_block_forward.1} parent=0 // loop_header
    %s15 = sphi 0, %s19
    %p16 = scmp.ge.s32.totalorder %s15, 4
    %s25 = sphi 0, %s27
    %s28 = sphi 0, %s25
    %s29 = sphi 0, %s28
    %s45 = sphi 0, %s29
    %s49 = sphi 0, %s49
    %s51 = sphi 0, %s49
    %s52 = sphi 0, %s51
    %s66 = sphi 0, %s52
    %s70 = sphi 0, %s70
    %s72 = sphi 0, %s70
    %s73 = sphi 0, %s72
    %s87 = sphi 0, %s73
    %s91 = sphi 0, %s91
    %s93 = sphi 0, %s91
    %s94 = sphi 0, %s93
    %s108 = sphi 0, %s94
    %s112 = sphi 0, %s112
    %s114 = sphi 0, %s112
    %s115 = sphi 0, %s114
    %s129 = sphi 0, %s115
    %s133 = sphi 0, %s133
    %s135 = sphi 0, %s133
    %s136 = sphi 0, %s135
    %s150 = sphi 0, %s136
    %s154 = sphi 0, %s154
    %s156 = sphi 0, %s154
    %s157 = sphi 0, %s156
    %s171 = sphi 0, %s157
    %s175 = sphi 0, %s175
    %s177 = sphi 0, %s175
    %s178 = sphi 0, %s177
    %s192 = sphi 0, %s178
    %s196 = sphi 0, %s196
    %s198 = sphi 0, %s196
    %s199 = sphi 0, %s198
    %s213 = sphi 0, %s199
    %s219 = sphi 0, %s221
    %s222 = sphi 0, %s219
    %s223 = sphi 0, %s222
    %s239 = sphi 0, %s223
  $region4: #{down_block_forward.1} parent=0 // loop_header_branch
    %18 = sbr.rel (%p16) target = $region8
  $region5: #{down_block_forward.1} parent=0 // loop_body
    %s20 = ssub.s32 %s15, 1
    %s21 = ssub.s32 %s15, 2
    %s22 = sadd.s32 %s15, 1
    %s23 = ssub.s32 %s15, %s22
    %p24 = scmp.eq.s32.totalorder %s23, 0
    %s26 = sadd.s32 %s25, 1
    %s27 = scalar_select %p24, %s25, %s26
    %p30 = pneg %p24
    %p31 = scmp.eq.s32.totalorder %s15, 1
    %p32 = por %p30, %p31
    %p33 = scmp.ne.s32.totalorder %s25, %s28
    %p34 = scmp.eq.s32.totalorder %s15, 0
    %p35 = por %p33, %p34
    %p36 = scmp.ne.s32.totalorder %s25, %s28
    %p37 = scmp.eq.s32.totalorder %s20, 1
    %p38 = por %p36, %p37
    %p39 = scmp.ne.s32.totalorder %s28, %s29
    %p40 = scmp.eq.s32.totalorder %s20, 0
    %p41 = por %p39, %p40
    %p42 = scmp.ne.s32.totalorder %s28, %s29
    %p43 = scmp.eq.s32.totalorder %s21, 1
    %p44 = por %p42, %p43
    %p46 = scmp.ne.s32.totalorder %s29, %s45
    %p47 = scmp.eq.s32.totalorder %s21, 0
    %p48 = por %p46, %p47
    %s50 = sadd.s32 %s49, 1
    %p53 = scmp.eq.s32.totalorder %s15, 1
    %p54 = scmp.ne.s32.totalorder %s49, %s51
    %p55 = scmp.eq.s32.totalorder %s15, 0
    %p56 = por %p54, %p55
    %p57 = scmp.ne.s32.totalorder %s49, %s51
    %p58 = scmp.eq.s32.totalorder %s20, 1
    %p59 = por %p57, %p58
    %p60 = scmp.ne.s32.totalorder %s51, %s52
    %p61 = scmp.eq.s32.totalorder %s20, 0
    %p62 = por %p60, %p61
    %p63 = scmp.ne.s32.totalorder %s51, %s52
    %p64 = scmp.eq.s32.totalorder %s21, 1
    %p65 = por %p63, %p64
    %p67 = scmp.ne.s32.totalorder %s52, %s66
    %p68 = scmp.eq.s32.totalorder %s21, 0
    %p69 = por %p67, %p68
    %s71 = sadd.s32 %s70, 1
    %p74 = scmp.eq.s32.totalorder %s15, 1
    %p75 = scmp.ne.s32.totalorder %s70, %s72
    %p76 = scmp.eq.s32.totalorder %s15, 0
    %p77 = por %p75, %p76
    %p78 = scmp.ne.s32.totalorder %s70, %s72
    %p79 = scmp.eq.s32.totalorder %s20, 1
    %p80 = por %p78, %p79
    %p81 = scmp.ne.s32.totalorder %s72, %s73
    %p82 = scmp.eq.s32.totalorder %s20, 0
    %p83 = por %p81, %p82
    %p84 = scmp.ne.s32.totalorder %s72, %s73
    %p85 = scmp.eq.s32.totalorder %s21, 1
    %p86 = por %p84, %p85
    %p88 = scmp.ne.s32.totalorder %s73, %s87
    %p89 = scmp.eq.s32.totalorder %s21, 0
    %p90 = por %p88, %p89
    %s92 = sadd.s32 %s91, 1
    %p95 = scmp.eq.s32.totalorder %s15, 1
    %p96 = scmp.ne.s32.totalorder %s91, %s93
    %p97 = scmp.eq.s32.totalorder %s15, 0
    %p98 = por %p96, %p97
    %p99 = scmp.ne.s32.totalorder %s91, %s93
    %p100 = scmp.eq.s32.totalorder %s20, 1
    %p101 = por %p99, %p100
    %p102 = scmp.ne.s32.totalorder %s93, %s94
    %p103 = scmp.eq.s32.totalorder %s20, 0
    %p104 = por %p102, %p103
    %p105 = scmp.ne.s32.totalorder %s93, %s94
    %p106 = scmp.eq.s32.totalorder %s21, 1
    %p107 = por %p105, %p106
    %p109 = scmp.ne.s32.totalorder %s94, %s108
    %p110 = scmp.eq.s32.totalorder %s21, 0
    %p111 = por %p109, %p110
    %s113 = sadd.s32 %s112, 1
    %p116 = scmp.eq.s32.totalorder %s15, 1
    %p117 = scmp.ne.s32.totalorder %s112, %s114
    %p118 = scmp.eq.s32.totalorder %s15, 0
    %p119 = por %p117, %p118
    %p120 = scmp.ne.s32.totalorder %s112, %s114
    %p121 = scmp.eq.s32.totalorder %s20, 1
    %p122 = por %p120, %p121
    %p123 = scmp.ne.s32.totalorder %s114, %s115
    %p124 = scmp.eq.s32.totalorder %s20, 0
    %p125 = por %p123, %p124
    %p126 = scmp.ne.s32.totalorder %s114, %s115
    %p127 = scmp.eq.s32.totalorder %s21, 1
    %p128 = por %p126, %p127
    %p130 = scmp.ne.s32.totalorder %s115, %s129
    %p131 = scmp.eq.s32.totalorder %s21, 0
    %p132 = por %p130, %p131
    %s134 = sadd.s32 %s133, 1
    %p137 = scmp.eq.s32.totalorder %s15, 1
    %p138 = scmp.ne.s32.totalorder %s133, %s135
    %p139 = scmp.eq.s32.totalorder %s15, 0
    %p140 = por %p138, %p139
    %p141 = scmp.ne.s32.totalorder %s133, %s135
    %p142 = scmp.eq.s32.totalorder %s20, 1
    %p143 = por %p141, %p142
    %p144 = scmp.ne.s32.totalorder %s135, %s136
    %p145 = scmp.eq.s32.totalorder %s20, 0
    %p146 = por %p144, %p145
    %p147 = scmp.ne.s32.totalorder %s135, %s136
    %p148 = scmp.eq.s32.totalorder %s21, 1
    %p149 = por %p147, %p148
    %p151 = scmp.ne.s32.totalorder %s136, %s150
    %p152 = scmp.eq.s32.totalorder %s21, 0
    %p153 = por %p151, %p152
    %s155 = sadd.s32 %s154, 1
    %p158 = scmp.eq.s32.totalorder %s15, 1
    %p159 = scmp.ne.s32.totalorder %s154, %s156
    %p160 = scmp.eq.s32.totalorder %s15, 0
    %p161 = por %p159, %p160
    %p162 = scmp.ne.s32.totalorder %s154, %s156
    %p163 = scmp.eq.s32.totalorder %s20, 1
    %p164 = por %p162, %p163
    %p165 = scmp.ne.s32.totalorder %s156, %s157
    %p166 = scmp.eq.s32.totalorder %s20, 0
    %p167 = por %p165, %p166
    %p168 = scmp.ne.s32.totalorder %s156, %s157
    %p169 = scmp.eq.s32.totalorder %s21, 1
    %p170 = por %p168, %p169
    %p172 = scmp.ne.s32.totalorder %s157, %s171
    %p173 = scmp.eq.s32.totalorder %s21, 0
    %p174 = por %p172, %p173
    %s176 = sadd.s32 %s175, 1
    %p179 = scmp.eq.s32.totalorder %s15, 1
    %p180 = scmp.ne.s32.totalorder %s175, %s177
    %p181 = scmp.eq.s32.totalorder %s15, 0
    %p182 = por %p180, %p181
    %p183 = scmp.ne.s32.totalorder %s175, %s177
    %p184 = scmp.eq.s32.totalorder %s20, 1
    %p185 = por %p183, %p184
    %p186 = scmp.ne.s32.totalorder %s177, %s178
    %p187 = scmp.eq.s32.totalorder %s20, 0
    %p188 = por %p186, %p187
    %p189 = scmp.ne.s32.totalorder %s177, %s178
    %p190 = scmp.eq.s32.totalorder %s21, 1
    %p191 = por %p189, %p190
    %p193 = scmp.ne.s32.totalorder %s178, %s192
    %p194 = scmp.eq.s32.totalorder %s21, 0
    %p195 = por %p193, %p194
    %s197 = sadd.s32 %s196, 1
    %p200 = scmp.eq.s32.totalorder %s15, 1
    %p201 = scmp.ne.s32.totalorder %s196, %s198
    %p202 = scmp.eq.s32.totalorder %s15, 0
    %p203 = por %p201, %p202
    %p204 = scmp.ne.s32.totalorder %s196, %s198
    %p205 = scmp.eq.s32.totalorder %s20, 1
    %p206 = por %p204, %p205
    %p207 = scmp.ne.s32.totalorder %s198, %s199
    %p208 = scmp.eq.s32.totalorder %s20, 0
    %p209 = por %p207, %p208
    %p210 = scmp.ne.s32.totalorder %s198, %s199
    %p211 = scmp.eq.s32.totalorder %s21, 1
    %p212 = por %p210, %p211
    %p214 = scmp.ne.s32.totalorder %s199, %s213
    %p215 = scmp.eq.s32.totalorder %s21, 0
    %p216 = por %p214, %p215
    %s217 = ssub.s32 %s15, %s22
    %p218 = scmp.eq.s32.totalorder %s217, 0
    %s220 = sadd.s32 %s219, 1
    %s221 = scalar_select %p218, %s219, %s220
    %p224 = pneg %p218
    %p225 = scmp.eq.s32.totalorder %s15, 1
    %p226 = por %p224, %p225
    %p227 = scmp.ne.s32.totalorder %s219, %s222
    %p228 = scmp.eq.s32.totalorder %s15, 0
    %p229 = por %p227, %p228
    %p230 = scmp.ne.s32.totalorder %s219, %s222
    %p231 = scmp.eq.s32.totalorder %s20, 1
    %p232 = por %p230, %p231
    %p233 = scmp.ne.s32.totalorder %s222, %s223
    %p234 = scmp.eq.s32.totalorder %s20, 0
    %p235 = por %p233, %p234
    %p236 = scmp.ne.s32.totalorder %s222, %s223
    %p237 = scmp.eq.s32.totalorder %s21, 1
    %p238 = por %p236, %p237
    %p240 = scmp.ne.s32.totalorder %s223, %s239
    %p241 = scmp.eq.s32.totalorder %s21, 0
    %p242 = por %p240, %p241
    %p243 = scmp.le.s32.totalorder 1, %s15
    %p244 = scmp.lt.s32.totalorder %s15, 3
    %p245 = pnand %p243, %p244
    %p246 = pneg %p245
    // Predicated region
    $region9: #{down_block_forward.1} parent=5 // pred_check
      _
    $region10: #{down_block_forward.1} parent=5 // pred_check_branch
      %248 = sbr.rel (%p245) target = $region12
    $region11: #{down_block_forward.1} parent=5 // pred_region
      %s249 = ssub.s32 %s15, 1
      // Predicated region
      $region13: #{down_block_forward.1} parent=11 // pred_check
        %p250 = pneg %p62
      $region14: #{down_block_forward.1} parent=11 // pred_check_branch
        %252 = sbr.rel (%p250) target = $region16
      $region15: #{down_block_forward.1} parent=11 // pred_region
        _
      $region16: #{down_block_forward.1} parent=11 // pred_fallthru
        _
      // Predicated region
      $region17: #{down_block_forward.1} parent=11 // pred_check
        %p253 = pneg %p83
      $region18: #{down_block_forward.1} parent=11 // pred_check_branch
        %255 = sbr.rel (%p253) target = $region20
      $region19: #{down_block_forward.1} parent=11 // pred_region
        _
      $region20: #{down_block_forward.1} parent=11 // pred_fallthru
        _
      // Predicated region
      $region21: #{down_block_forward.1} parent=11 // pred_check
        %p256 = pneg %p104
      $region22: #{down_block_forward.1} parent=11 // pred_check_branch
        %258 = sbr.rel (%p256) target = $region24
      $region23: #{down_block_forward.1} parent=11 // pred_region
        _
      $region24: #{down_block_forward.1} parent=11 // pred_fallthru
        _
      // Predicated region
      $region25: #{down_block_forward.1} parent=11 // pred_check
        %p259 = pneg %p125
      $region26: #{down_block_forward.1} parent=11 // pred_check_branch
        %261 = sbr.rel (%p259) target = $region28
      $region27: #{down_block_forward.1} parent=11 // pred_region
        _
      $region28: #{down_block_forward.1} parent=11 // pred_fallthru
        _
      // Predicated region
      $region29: #{down_block_forward.1} parent=11 // pred_check
        %p262 = pneg %p146
      $region30: #{down_block_forward.1} parent=11 // pred_check_branch
        %264 = sbr.rel (%p262) target = $region32
      $region31: #{down_block_forward.1} parent=11 // pred_region
        _
      $region32: #{down_block_forward.1} parent=11 // pred_fallthru
        _
      // Predicated region
      $region33: #{down_block_forward.1} parent=11 // pred_check
        %p265 = pneg %p167
      $region34: #{down_block_forward.1} parent=11 // pred_check_branch
        %267 = sbr.rel (%p265) target = $region36
      $region35: #{down_block_forward.1} parent=11 // pred_region
        _
      $region36: #{down_block_forward.1} parent=11 // pred_fallthru
        _
      // Predicated region
      $region37: #{down_block_forward.1} parent=11 // pred_check
        %p268 = pneg %p188
      $region38: #{down_block_forward.1} parent=11 // pred_check_branch
        %270 = sbr.rel (%p268) target = $region40
      $region39: #{down_block_forward.1} parent=11 // pred_region
        _
      $region40: #{down_block_forward.1} parent=11 // pred_fallthru
        _
      // Predicated region
      $region41: #{down_block_forward.1} parent=11 // pred_check
        %p271 = pneg %p209
      $region42: #{down_block_forward.1} parent=11 // pred_check_branch
        %273 = sbr.rel (%p271) target = $region44
      $region43: #{down_block_forward.1} parent=11 // pred_region
        _
      $region44: #{down_block_forward.1} parent=11 // pred_fallthru
        _
    $region12: #{down_block_forward.1} parent=5 // pred_fallthru
      _
    %p274 = scmp.lt.s32.totalorder %s15, 2
    // Predicated region
    $region45: #{down_block_forward.1} parent=5 // pred_check
      %p275 = pneg %p274
    $region46: #{down_block_forward.1} parent=5 // pred_check_branch
      %277 = sbr.rel (%p275) target = $region48
    $region47: #{down_block_forward.1} parent=5 // pred_region
      // Predicated region
      $region49: #{down_block_forward.1} parent=47 // pred_check
        %p278 = pneg %p35
      $region50: #{down_block_forward.1} parent=47 // pred_check_branch
        %280 = sbr.rel (%p278) target = $region52
      $region51: #{down_block_forward.1} parent=47 // pred_region
        %p281 = scmp.lt.s32.totalorder %s15, 1
        %s282 = scalar_select %p281, %s15, 1
        %s283 = smul.addr %s282, 8
        %s284 = smul.addr %s283, 4
        %s285 = scalar_lea.vmem %s0, %s284
      $region52: #{down_block_forward.1} parent=47 // pred_fallthru
        _
    $region48: #{down_block_forward.1} parent=5 // pred_fallthru
      _
    %p286 = scmp.le.s32.totalorder 1, %s15
    %p287 = scmp.lt.s32.totalorder %s15, 3
    %p288 = pnand %p286, %p287
    %p289 = pneg %p288
    // Predicated region
    $region53: #{down_block_forward.1} parent=5 // pred_check
      _
    $region54: #{down_block_forward.1} parent=5 // pred_check_branch
      %291 = sbr.rel (%p288) target = $region56
    $region55: #{down_block_forward.1} parent=5 // pred_region
      %s292 = ssub.s32 %s15, 1
      %p293 = scmp.lt.s32.totalorder %s20, 1
      %s294 = scalar_select %p293, %s20, 1
      %s295 = smul.addr %s294, 8
      %s296 = smul.addr %s295, 4
      %s297 = scalar_lea.vmem %s0, %s296
      %p298 = pneg %p41
      %p299 = pneg %p38
      %p300 = pneg %p62
      %p301 = pneg %p59
      %p302 = pneg %p83
      %p303 = pneg %p80
      %p304 = pneg %p104
      %p305 = pneg %p101
      %p306 = pneg %p125
      %p307 = pneg %p122
      %p308 = pneg %p146
      %p309 = pneg %p143
      %p310 = pneg %p167
      %p311 = pneg %p164
      %p312 = pneg %p188
      %p313 = pneg %p185
      %p314 = pneg %p209
      %p315 = pneg %p206
      %p316 = pneg %p235
      %p317 = pneg %p232
      %p318 = scmp.lt.s32.totalorder %s20, 1
      %s319 = scalar_select %p318, %s20, 1
      %s320 = smul.addr %s319, 8
      %s321 = smul.addr %s320, 8
      %s322 = scalar_lea.vmem %s9, %s321
      %p323 = scmp.lt.s32.totalorder %s20, 1
      %s324 = scalar_select %p323, %s20, 1
      %s325 = smul.addr %s324, 8
      %s326 = smul.addr %s325, 4
      %s327 = scalar_lea.vmem %s0, %s326
      %p328 = scmp.lt.s32.totalorder %s20, 1
      %s329 = scalar_select %p328, %s20, 1
      %s330 = smul.addr %s329, 8
      %s331 = smul.addr %s330, 8
      %s332 = scalar_lea.vmem %s9, %s331
      %v334 = vld [vmem:[%s327] sm:$0xf]
      %v335 = vld [vmem:[%s327 + $0x4] sm:$0xf]
      %v336 = vld [vmem:[%s327 + $0x8] sm:$0xf]
      %v337 = vld [vmem:[%s327 + $0xc] sm:$0xf]
      %v338 = vld [vmem:[%s327 + $0x10] sm:$0xf]
      %v339 = vld [vmem:[%s327 + $0x14] sm:$0xf]
      %v340 = vld [vmem:[%s327 + $0x18] sm:$0xf]
      %v341 = vld [vmem:[%s327 + $0x1c] sm:$0xf]
      %v342 = vld [vmem:[%s1] sm:$0xf]
      %v343 = vld [vmem:[%s1 + $0x4] sm:$0xf]
      %v344 = vld [vmem:[%s1 + $0x8] sm:$0xf]
      %v345 = vld [vmem:[%s1 + $0xc] sm:$0xf]
      %v346 = vld [vmem:[%s1 + $0x10] sm:$0x3]
      %v347 = vld [vmem:[%s2] sm:$0x1]
      %v349 = vperm.slane %v347, 0
      %v359 = vunpack.c.l.b16 %v334
      %v360 = vunpack.c.l.b16 %v335
      %v361 = vunpack.c.l.b16 %v336
      %v362 = vunpack.c.l.b16 %v337
      %v363 = vunpack.c.l.b16 %v338
      %v364 = vunpack.c.l.b16 %v339
      %v365 = vunpack.c.l.b16 %v340
      %v366 = vunpack.c.l.b16 %v341
      %v367 = vpack.c.b16 %v360, %v359
      %v368 = vpack.c.b16 %v362, %v361
      %v369 = vpack.c.b16 %v364, %v363
      %v370 = vpack.c.b16 %v366, %v365
      %v376 = vunpack.c.l.b16 %v342
      %v377 = vunpack.c.l.b16 %v343
      %v378 = vunpack.c.l.b16 %v344
      %v379 = vunpack.c.l.b16 %v345
      %v380 = vunpack.c.l.b16 %v346
      %v381 = vpack.c.b16 %v377, %v376
      %v382 = vpack.c.b16 %v379, %v378
      %v383 = vpack.c.b16 %v380, %v380
      %vm386 = vcmask 293888
      %v388 = vsel %vm386, %v367, 0
      %v391 = vsel %vm386, %v368, 0
      %v394 = vsel %vm386, %v369, 0
      %v397 = vsel %vm386, %v370, 0
      %vm399 = vcmask 1041408
      %v401 = vsel %vm399, %v383, 0
      %403 = vmatpush.bf16.msra.mxu0 0
      %404 = vmatpush.bf16.msra.mxu0 0
      %405 = vmatpush.bf16.msra.mxu0 0
      %406 = vmatpush.bf16.msra.mxu0 0
      %407 = vmatpush.bf16.msra.mxu0 0
      %408 = vmatpush.bf16.msra.mxu0 %v401
      %409 = vmatpush.bf16.msra.mxu0 %v382
      %410 = vmatpush.bf16.msra.mxu0 %v381
      %411 = vmatmul.bf16.gmra.mxu0 %v388
      %v412 = vpop.f32.mrf.mxu0
      %v413 = vadd.f32 %v349, %v412
      %v414 = vpop.f32.mrf.mxu0
      %v415 = vadd.f32 %v349, %v414
      %416 = vmatmul.bf16.gmra.mxu0 %v391
      %v417 = vpop.f32.mrf.mxu0
      %v418 = vadd.f32 %v349, %v417
      %v419 = vpop.f32.mrf.mxu0
      %v420 = vadd.f32 %v349, %v419
      %421 = vmatmul.bf16.gmra.mxu0 %v394
      %v422 = vpop.f32.mrf.mxu0
      %v423 = vadd.f32 %v349, %v422
      %v424 = vpop.f32.mrf.mxu0
      %v425 = vadd.f32 %v349, %v424
      %426 = vmatmul.bf16.gmra.mxu0 %v397
      %v427 = vpop.f32.mrf.mxu0
      %v428 = vadd.f32 %v349, %v427
      %v429 = vpop.f32.mrf.mxu0
      %v430 = vadd.f32 %v349, %v429
      %431 = vdwg.mxu0
      %vm432 = vcmask 64512
      %433 = vst.msk [vmem:[#allocation2] sm:$0xff] %vm432, 0.0
      %vm434 = vcmask 58368
      %435 = vst.msk [vmem:[#allocation2 + $0x8] sm:$0x3] %vm434, 0.0
      %s436 = scalar_lea.vmem [#allocation2], 144
      %437 = vst.msk [vmem:[%s436] sm:$0xff] %vm432, 0.0
      %438 = vst.msk [vmem:[%s436 + $0x8] sm:$0x3] %vm434, 0.0
      %vm439 = vcmask 57344
      %440 = vst.msk [vmem:[#allocation2] sm:$0x1] %vm439, 0.0
      %441 = vst.msk [vmem:[#allocation2 + $0x10] sm:$0x1] %vm439, 0.0
      %442 = vst.msk [vmem:[#allocation2 + $0x20] sm:$0x1] %vm439, 0.0
      %443 = vst.msk [vmem:[#allocation2 + $0x30] sm:$0x1] %vm439, 0.0
      %444 = vst.msk [vmem:[#allocation2 + $0x40] sm:$0x1] %vm439, 0.0
      %445 = vst.msk [vmem:[#allocation2 + $0x50] sm:$0x1] %vm439, 0.0
      %446 = vst.msk [vmem:[#allocation2 + $0x60] sm:$0x1] %vm439, 0.0
      %447 = vst.msk [vmem:[#allocation2 + $0x70] sm:$0x1] %vm439, 0.0
      %448 = vst.msk [vmem:[#allocation2 + $0x80] sm:$0x1] %vm439, 0.0
      %449 = vst.msk [vmem:[#allocation2 + $0x90] sm:$0x1] %vm439, 0.0
      %450 = vst.msk [vmem:[#allocation2 + $0x9] sm:$0x1] %vm439, 0.0
      %451 = vst.msk [vmem:[#allocation2 + $0x19] sm:$0x1] %vm439, 0.0
      %452 = vst.msk [vmem:[#allocation2 + $0x29] sm:$0x1] %vm439, 0.0
      %453 = vst.msk [vmem:[#allocation2 + $0x39] sm:$0x1] %vm439, 0.0
      %454 = vst.msk [vmem:[#allocation2 + $0x49] sm:$0x1] %vm439, 0.0
      %455 = vst.msk [vmem:[#allocation2 + $0x59] sm:$0x1] %vm439, 0.0
      %456 = vst.msk [vmem:[#allocation2 + $0x69] sm:$0x1] %vm439, 0.0
      %457 = vst.msk [vmem:[#allocation2 + $0x79] sm:$0x1] %vm439, 0.0
      %458 = vst.msk [vmem:[#allocation2 + $0x89] sm:$0x1] %vm439, 0.0
      %459 = vst.msk [vmem:[#allocation2 + $0x99] sm:$0x1] %vm439, 0.0
      %v460 = vld [vmem:[%s7] sm:$0xff]
      %v461 = vld [vmem:[%s8] sm:$0x3]
      %s462 = scalar_lea.vmem [#allocation2], 16
      %463 = vst.msk [vmem:[%s462 + $0x1] sm:$0xff] %vm432, %v413
      %464 = vst.msk [vmem:[%s462 + $0x11] sm:$0xff] %vm432, %v415
      %465 = vst.msk [vmem:[%s462 + $0x21] sm:$0xff] %vm432, %v418
      %466 = vst.msk [vmem:[%s462 + $0x31] sm:$0xff] %vm432, %v420
      %467 = vst.msk [vmem:[%s462 + $0x41] sm:$0xff] %vm432, %v423
      %468 = vst.msk [vmem:[%s462 + $0x51] sm:$0xff] %vm432, %v425
      %469 = vst.msk [vmem:[%s462 + $0x61] sm:$0xff] %vm432, %v428
      %470 = vst.msk [vmem:[%s462 + $0x71] sm:$0xff] %vm432, %v430
      %v471 = vld [vmem:[#allocation2] sm:$0xff]
      %v472 = vld [vmem:[#allocation2 + $0x10] sm:$0xff]
      %v473 = vld [vmem:[#allocation2 + $0x20] sm:$0xff]
      %v474 = vld [vmem:[#allocation2 + $0x30] sm:$0xff]
      %v475 = vld [vmem:[#allocation2 + $0x40] sm:$0xff]
      %v476 = vld [vmem:[#allocation2 + $0x50] sm:$0xff]
      %v477 = vld [vmem:[#allocation2 + $0x60] sm:$0xff]
      %v478 = vld [vmem:[#allocation2 + $0x70] sm:$0xff]
      %v479 = vld [vmem:[%s462] sm:$0xff]
      %v480 = vld [vmem:[%s462 + $0x10] sm:$0xff]
      %v481 = vld [vmem:[%s462 + $0x20] sm:$0xff]
      %v482 = vld [vmem:[%s462 + $0x30] sm:$0xff]
      %v483 = vld [vmem:[%s462 + $0x40] sm:$0xff]
      %v484 = vld [vmem:[%s462 + $0x50] sm:$0xff]
      %v485 = vld [vmem:[%s462 + $0x60] sm:$0xff]
      %v486 = vld [vmem:[%s462 + $0x70] sm:$0xff]
      %s487 = scalar_lea.vmem [#allocation2], 32
      %v488 = vld [vmem:[%s487] sm:$0xff]
      %v489 = vld [vmem:[%s487 + $0x10] sm:$0xff]
      %v490 = vld [vmem:[%s487 + $0x20] sm:$0xff]
      %v491 = vld [vmem:[%s487 + $0x30] sm:$0xff]
      %v492 = vld [vmem:[%s487 + $0x40] sm:$0xff]
      %v493 = vld [vmem:[%s487 + $0x50] sm:$0xff]
      %v494 = vld [vmem:[%s487 + $0x60] sm:$0xff]
      %v495 = vld [vmem:[%s487 + $0x70] sm:$0xff]
      %504 = vrot.lane.b32.xlu0 %v479, 8
      %v505 = vpop.permute.xlu0 %504
      %506 = vrot.lane.b32.xlu0 %v480, 8
      %v507 = vpop.permute.xlu0 %506
      %508 = vrot.lane.b32.xlu0 %v481, 8
      %v509 = vpop.permute.xlu0 %508
      %510 = vrot.lane.b32.xlu0 %v482, 8
      %v511 = vpop.permute.xlu0 %510
      %512 = vrot.lane.b32.xlu0 %v483, 8
      %v513 = vpop.permute.xlu0 %512
      %514 = vrot.lane.b32.xlu0 %v484, 8
      %v515 = vpop.permute.xlu0 %514
      %516 = vrot.lane.b32.xlu0 %v485, 8
      %v517 = vpop.permute.xlu0 %516
      %518 = vrot.lane.b32.xlu0 %v486, 8
      %v519 = vpop.permute.xlu0 %518
      %536 = vrot.lane.b32.xlu0 %v488, 16
      %v537 = vpop.permute.xlu0 %536
      %538 = vrot.lane.b32.xlu0 %v489, 16
      %v539 = vpop.permute.xlu0 %538
      %540 = vrot.lane.b32.xlu0 %v490, 16
      %v541 = vpop.permute.xlu0 %540
      %542 = vrot.lane.b32.xlu0 %v491, 16
      %v543 = vpop.permute.xlu0 %542
      %544 = vrot.lane.b32.xlu0 %v492, 16
      %v545 = vpop.permute.xlu0 %544
      %546 = vrot.lane.b32.xlu0 %v493, 16
      %v547 = vpop.permute.xlu0 %546
      %548 = vrot.lane.b32.xlu0 %v494, 16
      %v549 = vpop.permute.xlu0 %548
      %550 = vrot.lane.b32.xlu0 %v495, 16
      %v551 = vpop.permute.xlu0 %550
      %v560 = vsel %vm432, %v471, %v505
      %v561 = vsel %vm432, %v472, %v507
      %v562 = vsel %vm432, %v473, %v509
      %v563 = vsel %vm432, %v474, %v511
      %v564 = vsel %vm432, %v475, %v513
      %v565 = vsel %vm432, %v476, %v515
      %v566 = vsel %vm432, %v477, %v517
      %v567 = vsel %vm432, %v478, %v519
      %vm568 = vcmask 130048
      %v569 = vsel %vm568, %v560, %v537
      %v570 = vsel %vm568, %v561, %v539
      %v571 = vsel %vm568, %v562, %v541
      %v572 = vsel %vm568, %v563, %v543
      %v573 = vsel %vm568, %v564, %v545
      %v574 = vsel %vm568, %v565, %v547
      %v575 = vsel %vm568, %v566, %v549
      %v576 = vsel %vm568, %v567, %v551
      %v577 = vpack.c.bf16 %v570, %v569
      %v578 = vpack.c.bf16 %v572, %v571
      %v579 = vpack.c.bf16 %v574, %v573
      %v580 = vpack.c.bf16 %v576, %v575
      %v581 = vld [vmem:[%s3] sm:$0xf]
      %v582 = vld [vmem:[%s3 + $0x4] sm:$0xf]
      %v583 = vld [vmem:[%s3 + $0x8] sm:$0xf]
      %v584 = vld [vmem:[#allocation2 + $0x1] sm:$0xff]
      %v585 = vld [vmem:[#allocation2 + $0x11] sm:$0xff]
      %v586 = vld [vmem:[#allocation2 + $0x21] sm:$0xff]
      %v587 = vld [vmem:[#allocation2 + $0x31] sm:$0xff]
      %v588 = vld [vmem:[#allocation2 + $0x41] sm:$0xff]
      %v589 = vld [vmem:[#allocation2 + $0x51] sm:$0xff]
      %v590 = vld [vmem:[#allocation2 + $0x61] sm:$0xff]
      %v591 = vld [vmem:[#allocation2 + $0x71] sm:$0xff]
      %v592 = vld [vmem:[%s462 + $0x1] sm:$0xff]
      %v593 = vld [vmem:[%s462 + $0x11] sm:$0xff]
      %v594 = vld [vmem:[%s462 + $0x21] sm:$0xff]
      %v595 = vld [vmem:[%s462 + $0x31] sm:$0xff]
      %v596 = vld [vmem:[%s462 + $0x41] sm:$0xff]
      %v597 = vld [vmem:[%s462 + $0x51] sm:$0xff]
      %v598 = vld [vmem:[%s462 + $0x61] sm:$0xff]
      %v599 = vld [vmem:[%s462 + $0x71] sm:$0xff]
      %v600 = vld [vmem:[%s487 + $0x1] sm:$0xff]
      %v601 = vld [vmem:[%s487 + $0x11] sm:$0xff]
      %v602 = vld [vmem:[%s487 + $0x21] sm:$0xff]
      %v603 = vld [vmem:[%s487 + $0x31] sm:$0xff]
      %v604 = vld [vmem:[%s487 + $0x41] sm:$0xff]
      %v605 = vld [vmem:[%s487 + $0x51] sm:$0xff]
      %v606 = vld [vmem:[%s487 + $0x61] sm:$0xff]
      %v607 = vld [vmem:[%s487 + $0x71] sm:$0xff]
      %616 = vrot.lane.b32.xlu0 %v592, 8
      %v617 = vpop.permute.xlu0 %616
      %618 = vrot.lane.b32.xlu0 %v593, 8
      %v619 = vpop.permute.xlu0 %618
      %620 = vrot.lane.b32.xlu0 %v594, 8
      %v621 = vpop.permute.xlu0 %620
      %622 = vrot.lane.b32.xlu0 %v595, 8
      %v623 = vpop.permute.xlu0 %622
      %624 = vrot.lane.b32.xlu0 %v596, 8
      %v625 = vpop.permute.xlu0 %624
      %626 = vrot.lane.b32.xlu0 %v597, 8
      %v627 = vpop.permute.xlu0 %626
      %628 = vrot.lane.b32.xlu0 %v598, 8
      %v629 = vpop.permute.xlu0 %628
      %630 = vrot.lane.b32.xlu0 %v599, 8
      %v631 = vpop.permute.xlu0 %630
      %648 = vrot.lane.b32.xlu0 %v600, 16
      %v649 = vpop.permute.xlu0 %648
      %650 = vrot.lane.b32.xlu0 %v601, 16
      %v651 = vpop.permute.xlu0 %650
      %652 = vrot.lane.b32.xlu0 %v602, 16
      %v653 = vpop.permute.xlu0 %652
      %654 = vrot.lane.b32.xlu0 %v603, 16
      %v655 = vpop.permute.xlu0 %654
      %656 = vrot.lane.b32.xlu0 %v604, 16
      %v657 = vpop.permute.xlu0 %656
      %658 = vrot.lane.b32.xlu0 %v605, 16
      %v659 = vpop.permute.xlu0 %658
      %660 = vrot.lane.b32.xlu0 %v606, 16
      %v661 = vpop.permute.xlu0 %660
      %662 = vrot.lane.b32.xlu0 %v607, 16
      %v663 = vpop.permute.xlu0 %662
      %v672 = vsel %vm432, %v584, %v617
      %v673 = vsel %vm432, %v585, %v619
      %v674 = vsel %vm432, %v586, %v621
      %v675 = vsel %vm432, %v587, %v623
      %v676 = vsel %vm432, %v588, %v625
      %v677 = vsel %vm432, %v589, %v627
      %v678 = vsel %vm432, %v590, %v629
      %v679 = vsel %vm432, %v591, %v631
      %v680 = vsel %vm568, %v672, %v649
      %v681 = vsel %vm568, %v673, %v651
      %v682 = vsel %vm568, %v674, %v653
      %v683 = vsel %vm568, %v675, %v655
      %v684 = vsel %vm568, %v676, %v657
      %v685 = vsel %vm568, %v677, %v659
      %v686 = vsel %vm568, %v678, %v661
      %v687 = vsel %vm568, %v679, %v663
      %v688 = vpack.c.bf16 %v681, %v680
      %v689 = vpack.c.bf16 %v683, %v682
      %v690 = vpack.c.bf16 %v685, %v684
      %v691 = vpack.c.bf16 %v687, %v686
      %s692 = scalar_lea.vmem %s3, 12
      %v693 = vld [vmem:[%s692] sm:$0xf]
      %v694 = vld [vmem:[%s692 + $0x4] sm:$0xf]
      %v695 = vld [vmem:[%s692 + $0x8] sm:$0xf]
      %v699 = vunpack.c.l.b16 %v693
      %v700 = vunpack.c.l.b16 %v694
      %v701 = vunpack.c.l.b16 %v695
      %v702 = vpack.c.b16 %v700, %v699
      %v703 = vpack.c.b16 %v701, %v701
      %vm705 = vcmask 195584
      %v707 = vsel %vm705, %v688, 0
      %v710 = vsel %vm705, %v689, 0
      %v713 = vsel %vm705, %v690, 0
      %v716 = vsel %vm705, %v691, 0
      %vm718 = vcmask 1043456
      %v720 = vsel %vm718, %v703, 0
      %722 = vmatpush.bf16.msra.mxu0 0
      %723 = vmatpush.bf16.msra.mxu0 0
      %724 = vmatpush.bf16.msra.mxu0 0
      %725 = vmatpush.bf16.msra.mxu0 0
      %726 = vmatpush.bf16.msra.mxu0 0
      %727 = vmatpush.bf16.msra.mxu0 0
      %728 = vmatpush.bf16.msra.mxu0 %v720
      %729 = vmatpush.bf16.msra.mxu0 %v702
      %730 = vmatmul.bf16.gmra.mxu0 %v707
      %v731 = vpop.f32.mrf.mxu0
      %v732 = vadd.f32 0.0, %v731
      %v733 = vpop.f32.mrf.mxu0
      %v734 = vadd.f32 0.0, %v733
      %735 = vmatmul.bf16.gmra.mxu0 %v710
      %v736 = vpop.f32.mrf.mxu0
      %v737 = vadd.f32 0.0, %v736
      %v738 = vpop.f32.mrf.mxu0
      %v739 = vadd.f32 0.0, %v738
      %740 = vmatmul.bf16.gmra.mxu0 %v713
      %v741 = vpop.f32.mrf.mxu0
      %v742 = vadd.f32 0.0, %v741
      %v743 = vpop.f32.mrf.mxu0
      %v744 = vadd.f32 0.0, %v743
      %745 = vmatmul.bf16.gmra.mxu0 %v716
      %v746 = vpop.f32.mrf.mxu0
      %v747 = vadd.f32 0.0, %v746
      %v748 = vpop.f32.mrf.mxu0
      %v749 = vadd.f32 0.0, %v748
      %750 = vdwg.mxu0
      %v754 = vunpack.c.l.b16 %v581
      %v755 = vunpack.c.l.b16 %v582
      %v756 = vunpack.c.l.b16 %v583
      %v757 = vpack.c.b16 %v755, %v754
      %v758 = vpack.c.b16 %v756, %v756
      %v761 = vsel %vm705, %v577, 0
      %v764 = vsel %vm705, %v578, 0
      %v767 = vsel %vm705, %v579, 0
      %v770 = vsel %vm705, %v580, 0
      %v773 = vsel %vm718, %v758, 0
      %775 = vmatpush.bf16.msra.mxu0 0
      %776 = vmatpush.bf16.msra.mxu0 0
      %777 = vmatpush.bf16.msra.mxu0 0
      %778 = vmatpush.bf16.msra.mxu0 0
      %779 = vmatpush.bf16.msra.mxu0 0
      %780 = vmatpush.bf16.msra.mxu0 0
      %781 = vmatpush.bf16.msra.mxu0 %v773
      %782 = vmatpush.bf16.msra.mxu0 %v757
      %783 = vmatmul.bf16.gmra.mxu0 %v761
      %v784 = vpop.f32.mrf.mxu0
      %v785 = vadd.f32 %v732, %v784
      %v786 = vpop.f32.mrf.mxu0
      %v787 = vadd.f32 %v734, %v786
      %788 = vmatmul.bf16.gmra.mxu0 %v764
      %v789 = vpop.f32.mrf.mxu0
      %v790 = vadd.f32 %v737, %v789
      %v791 = vpop.f32.mrf.mxu0
      %v792 = vadd.f32 %v739, %v791
      %793 = vmatmul.bf16.gmra.mxu0 %v767
      %v794 = vpop.f32.mrf.mxu0
      %v795 = vadd.f32 %v742, %v794
      %v796 = vpop.f32.mrf.mxu0
      %v797 = vadd.f32 %v744, %v796
      %798 = vmatmul.bf16.gmra.mxu0 %v770
      %v799 = vpop.f32.mrf.mxu0
      %v800 = vadd.f32 %v747, %v799
      %v801 = vpop.f32.mrf.mxu0
      %v802 = vadd.f32 %v749, %v801
      %803 = vdwg.mxu0
      %v804 = vld [vmem:[#allocation2 + $0x2] sm:$0xff]
      %v805 = vld [vmem:[#allocation2 + $0x12] sm:$0xff]
      %v806 = vld [vmem:[#allocation2 + $0x22] sm:$0xff]
      %v807 = vld [vmem:[#allocation2 + $0x32] sm:$0xff]
      %v808 = vld [vmem:[#allocation2 + $0x42] sm:$0xff]
      %v809 = vld [vmem:[#allocation2 + $0x52] sm:$0xff]
      %v810 = vld [vmem:[#allocation2 + $0x62] sm:$0xff]
      %v811 = vld [vmem:[#allocation2 + $0x72] sm:$0xff]
      %v812 = vld [vmem:[%s462 + $0x2] sm:$0xff]
      %v813 = vld [vmem:[%s462 + $0x12] sm:$0xff]
      %v814 = vld [vmem:[%s462 + $0x22] sm:$0xff]
      %v815 = vld [vmem:[%s462 + $0x32] sm:$0xff]
      %v816 = vld [vmem:[%s462 + $0x42] sm:$0xff]
      %v817 = vld [vmem:[%s462 + $0x52] sm:$0xff]
      %v818 = vld [vmem:[%s462 + $0x62] sm:$0xff]
      %v819 = vld [vmem:[%s462 + $0x72] sm:$0xff]
      %v820 = vld [vmem:[%s487 + $0x2] sm:$0xff]
      %v821 = vld [vmem:[%s487 + $0x12] sm:$0xff]
      %v822 = vld [vmem:[%s487 + $0x22] sm:$0xff]
      %v823 = vld [vmem:[%s487 + $0x32] sm:$0xff]
      %v824 = vld [vmem:[%s487 + $0x42] sm:$0xff]
      %v825 = vld [vmem:[%s487 + $0x52] sm:$0xff]
      %v826 = vld [vmem:[%s487 + $0x62] sm:$0xff]
      %v827 = vld [vmem:[%s487 + $0x72] sm:$0xff]
      %836 = vrot.lane.b32.xlu0 %v812, 8
      %v837 = vpop.permute.xlu0 %836
      %838 = vrot.lane.b32.xlu0 %v813, 8
      %v839 = vpop.permute.xlu0 %838
      %840 = vrot.lane.b32.xlu0 %v814, 8
      %v841 = vpop.permute.xlu0 %840
      %842 = vrot.lane.b32.xlu0 %v815, 8
      %v843 = vpop.permute.xlu0 %842
      %844 = vrot.lane.b32.xlu0 %v816, 8
      %v845 = vpop.permute.xlu0 %844
      %846 = vrot.lane.b32.xlu0 %v817, 8
      %v847 = vpop.permute.xlu0 %846
      %848 = vrot.lane.b32.xlu0 %v818, 8
      %v849 = vpop.permute.xlu0 %848
      %850 = vrot.lane.b32.xlu0 %v819, 8
      %v851 = vpop.permute.xlu0 %850
      %868 = vrot.lane.b32.xlu0 %v820, 16
      %v869 = vpop.permute.xlu0 %868
      %870 = vrot.lane.b32.xlu0 %v821, 16
      %v871 = vpop.permute.xlu0 %870
      %872 = vrot.lane.b32.xlu0 %v822, 16
      %v873 = vpop.permute.xlu0 %872
      %874 = vrot.lane.b32.xlu0 %v823, 16
      %v875 = vpop.permute.xlu0 %874
      %876 = vrot.lane.b32.xlu0 %v824, 16
      %v877 = vpop.permute.xlu0 %876
      %878 = vrot.lane.b32.xlu0 %v825, 16
      %v879 = vpop.permute.xlu0 %878
      %880 = vrot.lane.b32.xlu0 %v826, 16
      %v881 = vpop.permute.xlu0 %880
      %882 = vrot.lane.b32.xlu0 %v827, 16
      %v883 = vpop.permute.xlu0 %882
      %v892 = vsel %vm432, %v804, %v837
      %v893 = vsel %vm432, %v805, %v839
      %v894 = vsel %vm432, %v806, %v841
      %v895 = vsel %vm432, %v807, %v843
      %v896 = vsel %vm432, %v808, %v845
      %v897 = vsel %vm432, %v809, %v847
      %v898 = vsel %vm432, %v810, %v849
      %v899 = vsel %vm432, %v811, %v851
      %v900 = vsel %vm568, %v892, %v869
      %v901 = vsel %vm568, %v893, %v871
      %v902 = vsel %vm568, %v894, %v873
      %v903 = vsel %vm568, %v895, %v875
      %v904 = vsel %vm568, %v896, %v877
      %v905 = vsel %vm568, %v897, %v879
      %v906 = vsel %vm568, %v898, %v881
      %v907 = vsel %vm568, %v899, %v883
      %v908 = vpack.c.bf16 %v901, %v900
      %v909 = vpack.c.bf16 %v903, %v902
      %v910 = vpack.c.bf16 %v905, %v904
      %v911 = vpack.c.bf16 %v907, %v906
      %s912 = scalar_lea.vmem %s3, 24
      %v913 = vld [vmem:[%s912] sm:$0xf]
      %v914 = vld [vmem:[%s912 + $0x4] sm:$0xf]
      %v915 = vld [vmem:[%s912 + $0x8] sm:$0xf]
      %v919 = vunpack.c.l.b16 %v913
      %v920 = vunpack.c.l.b16 %v914
      %v921 = vunpack.c.l.b16 %v915
      %v922 = vpack.c.b16 %v920, %v919
      %v923 = vpack.c.b16 %v921, %v921
      %v926 = vsel %vm705, %v908, 0
      %v929 = vsel %vm705, %v909, 0
      %v932 = vsel %vm705, %v910, 0
      %v935 = vsel %vm705, %v911, 0
      %v938 = vsel %vm718, %v923, 0
      %940 = vmatpush.bf16.msra.mxu0 0
      %941 = vmatpush.bf16.msra.mxu0 0
      %942 = vmatpush.bf16.msra.mxu0 0
      %943 = vmatpush.bf16.msra.mxu0 0
      %944 = vmatpush.bf16.msra.mxu0 0
      %945 = vmatpush.bf16.msra.mxu0 0
      %946 = vmatpush.bf16.msra.mxu0 %v938
      %947 = vmatpush.bf16.msra.mxu0 %v922
      %948 = vmatmul.bf16.gmra.mxu0 %v926
      %v949 = vpop.f32.mrf.mxu0
      %v950 = vadd.f32 0.0, %v949
      %v951 = vpop.f32.mrf.mxu0
      %v952 = vadd.f32 0.0, %v951
      %953 = vmatmul.bf16.gmra.mxu0 %v929
      %v954 = vpop.f32.mrf.mxu0
      %v955 = vadd.f32 0.0, %v954
      %v956 = vpop.f32.mrf.mxu0
      %v957 = vadd.f32 0.0, %v956
      %958 = vmatmul.bf16.gmra.mxu0 %v932
      %v959 = vpop.f32.mrf.mxu0
      %v960 = vadd.f32 0.0, %v959
      %v961 = vpop.f32.mrf.mxu0
      %v962 = vadd.f32 0.0, %v961
      %963 = vmatmul.bf16.gmra.mxu0 %v935
      %v964 = vpop.f32.mrf.mxu0
      %v965 = vadd.f32 0.0, %v964
      %v966 = vpop.f32.mrf.mxu0
      %v967 = vadd.f32 0.0, %v966
      %968 = vdwg.mxu0
      %v969 = vadd.f32 %v785, %v950
      %v970 = vadd.f32 %v787, %v952
      %v971 = vadd.f32 %v790, %v955
      %v972 = vadd.f32 %v792, %v957
      %v973 = vadd.f32 %v795, %v960
      %v974 = vadd.f32 %v797, %v962
      %v975 = vadd.f32 %v800, %v965
      %v976 = vadd.f32 %v802, %v967
      %v977 = vld [vmem:[%s4] sm:$0x1]
      %v979 = vperm.slane %v977, 0
      %v981 = vadd.f32 %v969, %v979
      %v982 = vadd.f32 %v970, %v979
      %v983 = vadd.f32 %v971, %v979
      %v984 = vadd.f32 %v972, %v979
      %v985 = vadd.f32 %v973, %v979
      %v986 = vadd.f32 %v974, %v979
      %v987 = vadd.f32 %v975, %v979
      %v988 = vadd.f32 %v976, %v979
      %v989 = vsel %vm432, %v981, 0.0
      %v990 = vsel %vm432, %v982, 0.0
      %v991 = vadd.f32 %v989, %v990
      %v992 = vsel %vm432, %v983, 0.0
      %v993 = vadd.f32 %v991, %v992
      %v994 = vsel %vm432, %v984, 0.0
      %v995 = vadd.f32 %v993, %v994
      %v996 = vsel %vm432, %v985, 0.0
      %v997 = vadd.f32 %v995, %v996
      %v998 = vsel %vm432, %v986, 0.0
      %v999 = vadd.f32 %v997, %v998
      %v1000 = vsel %vm432, %v987, 0.0
      %v1001 = vadd.f32 %v999, %v1000
      %v1002 = vsel %vm432, %v988, 0.0
      %v1003 = vadd.f32 %v1001, %v1002
      %v1004 = vrot.slane %v1003, 4
      %v1005 = vadd.f32 %v1003, %v1004
      %v1006 = vrot.slane %v1005, 2
      %v1007 = vadd.f32 %v1005, %v1006
      %v1008 = vrot.slane %v1007, 1
      %v1009 = vadd.f32 %v1007, %v1008
      %v1011 = vsel %vm432, %v1009, 0
      %1013 = vmatpush.msra.mxu0 0.0
      %1014 = vmatpush.msra.mxu0 0.0
      %1015 = vmatpush.msra.mxu0 0.0
      %1016 = vmatpush.msra.mxu0 0.0
      %1017 = vmatpush.msra.mxu0 0.0
      %1018 = vmatpush.msra.mxu0 0.0
      %1019 = vmatpush.msra.mxu0 0.0
      %1020 = vmatpush.msra.mxu0 0.0
      %1021 = vmatpush.msra.mxu0 0.0
      %1022 = vmatpush.msra.mxu0 0.0
      %1023 = vmatpush.msra.mxu0 0.0
      %1024 = vmatpush.msra.mxu0 0.0
      %1025 = vmatpush.msra.mxu0 0.0
      %1026 = vmatpush.msra.mxu0 0.0
      %1027 = vmatpush.msra.mxu0 0.0
      %1028 = vmatpush.msra.mxu0 %v460
      %1029 = vmatmul.f32.gmra.mxu0 %v1011
      %v1030 = vpop.f32.mrf.mxu0
      %v1031 = vadd.f32 0.0, %v1030
      %1032 = vdwg.mxu0
      %v1033 = vmul.f32 %v1031, 0.00390625
      %vm1034 = vcmask 15360
      %v1036 = vsel %vm1034, %v1033, 0
      %v1039 = vsel %vm399, %v461, 0
      %1041 = vmatpush.msra.mxu0 0.0
      %1042 = vmatpush.msra.mxu0 0.0
      %1043 = vmatpush.msra.mxu0 0.0
      %1044 = vmatpush.msra.mxu0 0.0
      %1045 = vmatpush.msra.mxu0 0.0
      %1046 = vmatpush.msra.mxu0 0.0
      %1047 = vmatpush.msra.mxu0 0.0
      %1048 = vmatpush.msra.mxu0 0.0
      %1049 = vmatpush.msra.mxu0 0.0
      %1050 = vmatpush.msra.mxu0 0.0
      %1051 = vmatpush.msra.mxu0 0.0
      %1052 = vmatpush.msra.mxu0 0.0
      %1053 = vmatpush.msra.mxu0 0.0
      %1054 = vmatpush.msra.mxu0 0.0
      %1055 = vmatpush.msra.mxu0 0.0
      %1056 = vmatpush.msra.mxu0 %v1039
      %1057 = vmatmul.f32.gmra.mxu0 %v1036
      %v1058 = vpop.f32.mrf.mxu0
      %v1059 = vadd.f32 0.0, %v1058
      %1060 = vdwg.mxu0
      %v1061 = vperm.slane %v1059, 0
      %v1062 = vsub.f32 %v981, %v1061
      %v1063 = vsub.f32 %v982, %v1061
      %v1064 = vsub.f32 %v983, %v1061
      %v1065 = vsub.f32 %v984, %v1061
      %v1066 = vsub.f32 %v985, %v1061
      %v1067 = vsub.f32 %v986, %v1061
      %v1068 = vsub.f32 %v987, %v1061
      %v1069 = vsub.f32 %v988, %v1061
      %v1070 = vmul.f32 %v1062, %v1062
      %v1071 = vmul.f32 %v1063, %v1063
      %v1072 = vmul.f32 %v1064, %v1064
      %v1073 = vmul.f32 %v1065, %v1065
      %v1074 = vmul.f32 %v1066, %v1066
      %v1075 = vmul.f32 %v1067, %v1067
      %v1076 = vmul.f32 %v1068, %v1068
      %v1077 = vmul.f32 %v1069, %v1069
      %v1078 = vsel %vm432, %v1070, 0.0
      %v1079 = vsel %vm432, %v1071, 0.0
      %v1080 = vadd.f32 %v1078, %v1079
      %v1081 = vsel %vm432, %v1072, 0.0
      %v1082 = vadd.f32 %v1080, %v1081
      %v1083 = vsel %vm432, %v1073, 0.0
      %v1084 = vadd.f32 %v1082, %v1083
      %v1085 = vsel %vm432, %v1074, 0.0
      %v1086 = vadd.f32 %v1084, %v1085
      %v1087 = vsel %vm432, %v1075, 0.0
      %v1088 = vadd.f32 %v1086, %v1087
      %v1089 = vsel %vm432, %v1076, 0.0
      %v1090 = vadd.f32 %v1088, %v1089
      %v1091 = vsel %vm432, %v1077, 0.0
      %v1092 = vadd.f32 %v1090, %v1091
      %v1093 = vrot.slane %v1092, 4
      %v1094 = vadd.f32 %v1092, %v1093
      %v1095 = vrot.slane %v1094, 2
      %v1096 = vadd.f32 %v1094, %v1095
      %v1097 = vrot.slane %v1096, 1
      %v1098 = vadd.f32 %v1096, %v1097
      %v1100 = vsel %vm432, %v1098, 0
      %1102 = vmatpush.msra.mxu0 0.0
      %1103 = vmatpush.msra.mxu0 0.0
      %1104 = vmatpush.msra.mxu0 0.0
      %1105 = vmatpush.msra.mxu0 0.0
      %1106 = vmatpush.msra.mxu0 0.0
      %1107 = vmatpush.msra.mxu0 0.0
      %1108 = vmatpush.msra.mxu0 0.0
      %1109 = vmatpush.msra.mxu0 0.0
      %1110 = vmatpush.msra.mxu0 0.0
      %1111 = vmatpush.msra.mxu0 0.0
      %1112 = vmatpush.msra.mxu0 0.0
      %1113 = vmatpush.msra.mxu0 0.0
      %1114 = vmatpush.msra.mxu0 0.0
      %1115 = vmatpush.msra.mxu0 0.0
      %1116 = vmatpush.msra.mxu0 0.0
      %1117 = vmatpush.msra.mxu0 %v460
      %1118 = vmatmul.f32.gmra.mxu0 %v1100
      %v1119 = vpop.f32.mrf.mxu0
      %v1120 = vadd.f32 0.0, %v1119
      %1121 = vdwg.mxu0
      %v1122 = vmul.f32 %v1120, 0.00390625
      %v1123 = vadd.f32 %v1122, 1e-05
      %v1124 = vrsqrt.pop %v1123
      %v1125 = vmul.f32 %v1124, %v1123
      %v1126 = vmul.f32 %v1125, %v1124
      %v1127 = vmul.f32 0.5, %v1126
      %v1128 = vsub.f32 1.5, %v1127
      %v1129 = vmul.f32 %v1124, %v1128
      %vm1130 = vweird.f32 %v1123
      %vm1131 = vweird.f32 %v1124
      %vm1132 = vmor %vm1130, %vm1131
      %v1133 = vsel %vm1132, %v1124, %v1129
      %v1135 = vsel %vm1034, %v1133, 0
      %1137 = vmatpush.msra.mxu0 0.0
      %1138 = vmatpush.msra.mxu0 0.0
      %1139 = vmatpush.msra.mxu0 0.0
      %1140 = vmatpush.msra.mxu0 0.0
      %1141 = vmatpush.msra.mxu0 0.0
      %1142 = vmatpush.msra.mxu0 0.0
      %1143 = vmatpush.msra.mxu0 0.0
      %1144 = vmatpush.msra.mxu0 0.0
      %1145 = vmatpush.msra.mxu0 0.0
      %1146 = vmatpush.msra.mxu0 0.0
      %1147 = vmatpush.msra.mxu0 0.0
      %1148 = vmatpush.msra.mxu0 0.0
      %1149 = vmatpush.msra.mxu0 0.0
      %1150 = vmatpush.msra.mxu0 0.0
      %1151 = vmatpush.msra.mxu0 0.0
      %1152 = vmatpush.msra.mxu0 %v1039
      %1153 = vmatmul.f32.gmra.mxu0 %v1135
      %v1154 = vpop.f32.mrf.mxu0
      %v1155 = vadd.f32 0.0, %v1154
      %1156 = vdwg.mxu0
      %v1157 = vperm.slane %v1155, 0
      %v1158 = vmul.f32 %v1062, %v1157
      %v1159 = vmul.f32 %v1063, %v1157
      %v1160 = vmul.f32 %v1064, %v1157
      %v1161 = vmul.f32 %v1065, %v1157
      %v1162 = vmul.f32 %v1066, %v1157
      %v1163 = vmul.f32 %v1067, %v1157
      %v1164 = vmul.f32 %v1068, %v1157
      %v1165 = vmul.f32 %v1069, %v1157
      %v1166 = vld [vmem:[%s5] sm:$0x1]
      %v1168 = vperm.slane %v1166, 0
      %v1170 = vmul.f32 %v1158, %v1168
      %v1171 = vmul.f32 %v1159, %v1168
      %v1172 = vmul.f32 %v1160, %v1168
      %v1173 = vmul.f32 %v1161, %v1168
      %v1174 = vmul.f32 %v1162, %v1168
      %v1175 = vmul.f32 %v1163, %v1168
      %v1176 = vmul.f32 %v1164, %v1168
      %v1177 = vmul.f32 %v1165, %v1168
      %v1178 = vld [vmem:[%s6] sm:$0x1]
      %v1180 = vperm.slane %v1178, 0
      %v1182 = vadd.f32 %v1170, %v1180
      %v1183 = vadd.f32 %v1171, %v1180
      %v1184 = vadd.f32 %v1172, %v1180
      %v1185 = vadd.f32 %v1173, %v1180
      %v1186 = vadd.f32 %v1174, %v1180
      %v1187 = vadd.f32 %v1175, %v1180
      %v1188 = vadd.f32 %v1176, %v1180
      %v1189 = vadd.f32 %v1177, %v1180
      %v1190 = vxor.u32 %v1182, 2147483648
      %v1191 = vxor.u32 %v1183, 2147483648
      %v1192 = vxor.u32 %v1184, 2147483648
      %v1193 = vxor.u32 %v1185, 2147483648
      %v1194 = vxor.u32 %v1186, 2147483648
      %v1195 = vxor.u32 %v1187, 2147483648
      %v1196 = vxor.u32 %v1188, 2147483648
      %v1197 = vxor.u32 %v1189, 2147483648
      %v1198 = vmul.f32 %v1190, 1.442695
      %v1199 = vpow.pop %v1198
      %v1200 = vmul.f32 %v1191, 1.442695
      %v1201 = vpow.pop %v1200
      %v1202 = vmul.f32 %v1192, 1.442695
      %v1203 = vpow.pop %v1202
      %v1204 = vmul.f32 %v1193, 1.442695
      %v1205 = vpow.pop %v1204
      %v1206 = vmul.f32 %v1194, 1.442695
      %v1207 = vpow.pop %v1206
      %v1208 = vmul.f32 %v1195, 1.442695
      %v1209 = vpow.pop %v1208
      %v1210 = vmul.f32 %v1196, 1.442695
      %v1211 = vpow.pop %v1210
      %v1212 = vmul.f32 %v1197, 1.442695
      %v1213 = vpow.pop %v1212
      %v1214 = vadd.f32 %v1199, 1.0
      %v1215 = vadd.f32 %v1201, 1.0
      %v1216 = vadd.f32 %v1203, 1.0
      %v1217 = vadd.f32 %v1205, 1.0
      %v1218 = vadd.f32 %v1207, 1.0
      %v1219 = vadd.f32 %v1209, 1.0
      %v1220 = vadd.f32 %v1211, 1.0
      %v1221 = vadd.f32 %v1213, 1.0
      %v1222 = vrcp.pop %v1214
      %v1223 = vmul.f32 %v1214, %v1222
      %v1224 = vsub.f32 1.0, %v1223
      %v1225 = vmul.f32 %v1222, %v1224
      %v1226 = vadd.f32 %v1222, %v1225
      %vm1227 = vweird.f32 %v1214
      %vm1228 = vweird.f32 %v1222
      %vm1229 = vmor %vm1227, %vm1228
      %v1230 = vsel %vm1229, %v1222, %v1226
      %v1231 = vand.u32 2147483647, %v1214
      %vm1232 = vcmp.eq.f32.partialorder %v1231, 8.507059e+37
      %v1233 = vand.u32 %v1214, 2147483648
      %v1234 = vor.u32 1.1754944e-38, %v1233
      %v1235 = vsel %vm1232, %v1234, %v1230
      %v1236 = vmul.f32 1.0, %v1235
      %v1237 = vrcp.pop %v1215
      %v1238 = vmul.f32 %v1215, %v1237
      %v1239 = vsub.f32 1.0, %v1238
      %v1240 = vmul.f32 %v1237, %v1239
      %v1241 = vadd.f32 %v1237, %v1240
      %vm1242 = vweird.f32 %v1215
      %vm1243 = vweird.f32 %v1237
      %vm1244 = vmor %vm1242, %vm1243
      %v1245 = vsel %vm1244, %v1237, %v1241
      %v1246 = vand.u32 2147483647, %v1215
      %vm1247 = vcmp.eq.f32.partialorder %v1246, 8.507059e+37
      %v1248 = vand.u32 %v1215, 2147483648
      %v1249 = vor.u32 1.1754944e-38, %v1248
      %v1250 = vsel %vm1247, %v1249, %v1245
      %v1251 = vmul.f32 1.0, %v1250
      %v1252 = vrcp.pop %v1216
      %v1253 = vmul.f32 %v1216, %v1252
      %v1254 = vsub.f32 1.0, %v1253
      %v1255 = vmul.f32 %v1252, %v1254
      %v1256 = vadd.f32 %v1252, %v1255
      %vm1257 = vweird.f32 %v1216
      %vm1258 = vweird.f32 %v1252
      %vm1259 = vmor %vm1257, %vm1258
      %v1260 = vsel %vm1259, %v1252, %v1256
      %v1261 = vand.u32 2147483647, %v1216
      %vm1262 = vcmp.eq.f32.partialorder %v1261, 8.507059e+37
      %v1263 = vand.u32 %v1216, 2147483648
      %v1264 = vor.u32 1.1754944e-38, %v1263
      %v1265 = vsel %vm1262, %v1264, %v1260
      %v1266 = vmul.f32 1.0, %v1265
      %v1267 = vrcp.pop %v1217
      %v1268 = vmul.f32 %v1217, %v1267
      %v1269 = vsub.f32 1.0, %v1268
      %v1270 = vmul.f32 %v1267, %v1269
      %v1271 = vadd.f32 %v1267, %v1270
      %vm1272 = vweird.f32 %v1217
      %vm1273 = vweird.f32 %v1267
      %vm1274 = vmor %vm1272, %vm1273
      %v1275 = vsel %vm1274, %v1267, %v1271
      %v1276 = vand.u32 2147483647, %v1217
      %vm1277 = vcmp.eq.f32.partialorder %v1276, 8.507059e+37
      %v1278 = vand.u32 %v1217, 2147483648
      %v1279 = vor.u32 1.1754944e-38, %v1278
      %v1280 = vsel %vm1277, %v1279, %v1275
      %v1281 = vmul.f32 1.0, %v1280
      %v1282 = vrcp.pop %v1218
      %v1283 = vmul.f32 %v1218, %v1282
      %v1284 = vsub.f32 1.0, %v1283
      %v1285 = vmul.f32 %v1282, %v1284
      %v1286 = vadd.f32 %v1282, %v1285
      %vm1287 = vweird.f32 %v1218
      %vm1288 = vweird.f32 %v1282
      %vm1289 = vmor %vm1287, %vm1288
      %v1290 = vsel %vm1289, %v1282, %v1286
      %v1291 = vand.u32 2147483647, %v1218
      %vm1292 = vcmp.eq.f32.partialorder %v1291, 8.507059e+37
      %v1293 = vand.u32 %v1218, 2147483648
      %v1294 = vor.u32 1.1754944e-38, %v1293
      %v1295 = vsel %vm1292, %v1294, %v1290
      %v1296 = vmul.f32 1.0, %v1295
      %v1297 = vrcp.pop %v1219
      %v1298 = vmul.f32 %v1219, %v1297
      %v1299 = vsub.f32 1.0, %v1298
      %v1300 = vmul.f32 %v1297, %v1299
      %v1301 = vadd.f32 %v1297, %v1300
      %vm1302 = vweird.f32 %v1219
      %vm1303 = vweird.f32 %v1297
      %vm1304 = vmor %vm1302, %vm1303
      %v1305 = vsel %vm1304, %v1297, %v1301
      %v1306 = vand.u32 2147483647, %v1219
      %vm1307 = vcmp.eq.f32.partialorder %v1306, 8.507059e+37
      %v1308 = vand.u32 %v1219, 2147483648
      %v1309 = vor.u32 1.1754944e-38, %v1308
      %v1310 = vsel %vm1307, %v1309, %v1305
      %v1311 = vmul.f32 1.0, %v1310
      %v1312 = vrcp.pop %v1220
      %v1313 = vmul.f32 %v1220, %v1312
      %v1314 = vsub.f32 1.0, %v1313
      %v1315 = vmul.f32 %v1312, %v1314
      %v1316 = vadd.f32 %v1312, %v1315
      %vm1317 = vweird.f32 %v1220
      %vm1318 = vweird.f32 %v1312
      %vm1319 = vmor %vm1317, %vm1318
      %v1320 = vsel %vm1319, %v1312, %v1316
      %v1321 = vand.u32 2147483647, %v1220
      %vm1322 = vcmp.eq.f32.partialorder %v1321, 8.507059e+37
      %v1323 = vand.u32 %v1220, 2147483648
      %v1324 = vor.u32 1.1754944e-38, %v1323
      %v1325 = vsel %vm1322, %v1324, %v1320
      %v1326 = vmul.f32 1.0, %v1325
      %v1327 = vrcp.pop %v1221
      %v1328 = vmul.f32 %v1221, %v1327
      %v1329 = vsub.f32 1.0, %v1328
      %v1330 = vmul.f32 %v1327, %v1329
      %v1331 = vadd.f32 %v1327, %v1330
      %vm1332 = vweird.f32 %v1221
      %vm1333 = vweird.f32 %v1327
      %vm1334 = vmor %vm1332, %vm1333
      %v1335 = vsel %vm1334, %v1327, %v1331
      %v1336 = vand.u32 2147483647, %v1221
      %vm1337 = vcmp.eq.f32.partialorder %v1336, 8.507059e+37
      %v1338 = vand.u32 %v1221, 2147483648
      %v1339 = vor.u32 1.1754944e-38, %v1338
      %v1340 = vsel %vm1337, %v1339, %v1335
      %v1341 = vmul.f32 1.0, %v1340
      %v1342 = vmul.f32 %v1182, %v1236
      %v1343 = vmul.f32 %v1183, %v1251
      %v1344 = vmul.f32 %v1184, %v1266
      %v1345 = vmul.f32 %v1185, %v1281
      %v1346 = vmul.f32 %v1186, %v1296
      %v1347 = vmul.f32 %v1187, %v1311
      %v1348 = vmul.f32 %v1188, %v1326
      %v1349 = vmul.f32 %v1189, %v1341
      %1350 = vst.msk [vmem:[%s462 + $0x1] sm:$0xff] %vm432, %v1342
      %1351 = vst.msk [vmem:[%s462 + $0x11] sm:$0xff] %vm432, %v1343
      %1352 = vst.msk [vmem:[%s462 + $0x21] sm:$0xff] %vm432, %v1344
      %1353 = vst.msk [vmem:[%s462 + $0x31] sm:$0xff] %vm432, %v1345
      %1354 = vst.msk [vmem:[%s462 + $0x41] sm:$0xff] %vm432, %v1346
      %1355 = vst.msk [vmem:[%s462 + $0x51] sm:$0xff] %vm432, %v1347
      %1356 = vst.msk [vmem:[%s462 + $0x61] sm:$0xff] %vm432, %v1348
      %1357 = vst.msk [vmem:[%s462 + $0x71] sm:$0xff] %vm432, %v1349
      %v1358 = vld [vmem:[#allocation2] sm:$0xff]
      %v1359 = vld [vmem:[#allocation2 + $0x10] sm:$0xff]
      %v1360 = vld [vmem:[#allocation2 + $0x20] sm:$0xff]
      %v1361 = vld [vmem:[#allocation2 + $0x30] sm:$0xff]
      %v1362 = vld [vmem:[#allocation2 + $0x40] sm:$0xff]
      %v1363 = vld [vmem:[#allocation2 + $0x50] sm:$0xff]
      %v1364 = vld [vmem:[#allocation2 + $0x60] sm:$0xff]
      %v1365 = vld [vmem:[#allocation2 + $0x70] sm:$0xff]
      %v1366 = vld [vmem:[%s462] sm:$0xff]
      %v1367 = vld [vmem:[%s462 + $0x10] sm:$0xff]
      %v1368 = vld [vmem:[%s462 + $0x20] sm:$0xff]
      %v1369 = vld [vmem:[%s462 + $0x30] sm:$0xff]
      %v1370 = vld [vmem:[%s462 + $0x40] sm:$0xff]
      %v1371 = vld [vmem:[%s462 + $0x50] sm:$0xff]
      %v1372 = vld [vmem:[%s462 + $0x60] sm:$0xff]
      %v1373 = vld [vmem:[%s462 + $0x70] sm:$0xff]
      %v1374 = vld [vmem:[%s487] sm:$0xff]
      %v1375 = vld [vmem:[%s487 + $0x10] sm:$0xff]
      %v1376 = vld [vmem:[%s487 + $0x20] sm:$0xff]
      %v1377 = vld [vmem:[%s487 + $0x30] sm:$0xff]
      %v1378 = vld [vmem:[%s487 + $0x40] sm:$0xff]
      %v1379 = vld [vmem:[%s487 + $0x50] sm:$0xff]
      %v1380 = vld [vmem:[%s487 + $0x60] sm:$0xff]
      %v1381 = vld [vmem:[%s487 + $0x70] sm:$0xff]
      %1390 = vrot.lane.b32.xlu0 %v1366, 8
      %v1391 = vpop.permute.xlu0 %1390
      %1392 = vrot.lane.b32.xlu0 %v1367, 8
      %v1393 = vpop.permute.xlu0 %1392
      %1394 = vrot.lane.b32.xlu0 %v1368, 8
      %v1395 = vpop.permute.xlu0 %1394
      %1396 = vrot.lane.b32.xlu0 %v1369, 8
      %v1397 = vpop.permute.xlu0 %1396
      %1398 = vrot.lane.b32.xlu0 %v1370, 8
      %v1399 = vpop.permute.xlu0 %1398
      %1400 = vrot.lane.b32.xlu0 %v1371, 8
      %v1401 = vpop.permute.xlu0 %1400
      %1402 = vrot.lane.b32.xlu0 %v1372, 8
      %v1403 = vpop.permute.xlu0 %1402
      %1404 = vrot.lane.b32.xlu0 %v1373, 8
      %v1405 = vpop.permute.xlu0 %1404
      %1422 = vrot.lane.b32.xlu0 %v1374, 16
      %v1423 = vpop.permute.xlu0 %1422
      %1424 = vrot.lane.b32.xlu0 %v1375, 16
      %v1425 = vpop.permute.xlu0 %1424
      %1426 = vrot.lane.b32.xlu0 %v1376, 16
      %v1427 = vpop.permute.xlu0 %1426
      %1428 = vrot.lane.b32.xlu0 %v1377, 16
      %v1429 = vpop.permute.xlu0 %1428
      %1430 = vrot.lane.b32.xlu0 %v1378, 16
      %v1431 = vpop.permute.xlu0 %1430
      %1432 = vrot.lane.b32.xlu0 %v1379, 16
      %v1433 = vpop.permute.xlu0 %1432
      %1434 = vrot.lane.b32.xlu0 %v1380, 16
      %v1435 = vpop.permute.xlu0 %1434
      %1436 = vrot.lane.b32.xlu0 %v1381, 16
      %v1437 = vpop.permute.xlu0 %1436
      %v1446 = vsel %vm432, %v1358, %v1391
      %v1447 = vsel %vm432, %v1359, %v1393
      %v1448 = vsel %vm432, %v1360, %v1395
      %v1449 = vsel %vm432, %v1361, %v1397
      %v1450 = vsel %vm432, %v1362, %v1399
      %v1451 = vsel %vm432, %v1363, %v1401
      %v1452 = vsel %vm432, %v1364, %v1403
      %v1453 = vsel %vm432, %v1365, %v1405
      %v1454 = vsel %vm568, %v1446, %v1423
      %v1455 = vsel %vm568, %v1447, %v1425
      %v1456 = vsel %vm568, %v1448, %v1427
      %v1457 = vsel %vm568, %v1449, %v1429
      %v1458 = vsel %vm568, %v1450, %v1431
      %v1459 = vsel %vm568, %v1451, %v1433
      %v1460 = vsel %vm568, %v1452, %v1435
      %v1461 = vsel %vm568, %v1453, %v1437
      %v1462 = vpack.c.bf16 %v1455, %v1454
      %v1463 = vpack.c.bf16 %v1457, %v1456
      %v1464 = vpack.c.bf16 %v1459, %v1458
      %v1465 = vpack.c.bf16 %v1461, %v1460
      %s1466 = scalar_lea.vmem %s3, 36
      %v1467 = vld [vmem:[%s1466] sm:$0xf]
      %v1468 = vld [vmem:[%s1466 + $0x4] sm:$0xf]
      %v1469 = vld [vmem:[%s1466 + $0x8] sm:$0xf]
      %v1470 = vld [vmem:[#allocation2 + $0x1] sm:$0xff]
      %v1471 = vld [vmem:[#allocation2 + $0x11] sm:$0xff]
      %v1472 = vld [vmem:[#allocation2 + $0x21] sm:$0xff]
      %v1473 = vld [vmem:[#allocation2 + $0x31] sm:$0xff]
      %v1474 = vld [vmem:[#allocation2 + $0x41] sm:$0xff]
      %v1475 = vld [vmem:[#allocation2 + $0x51] sm:$0xff]
      %v1476 = vld [vmem:[#allocation2 + $0x61] sm:$0xff]
      %v1477 = vld [vmem:[#allocation2 + $0x71] sm:$0xff]
      %v1478 = vld [vmem:[%s462 + $0x1] sm:$0xff]
      %v1479 = vld [vmem:[%s462 + $0x11] sm:$0xff]
      %v1480 = vld [vmem:[%s462 + $0x21] sm:$0xff]
      %v1481 = vld [vmem:[%s462 + $0x31] sm:$0xff]
      %v1482 = vld [vmem:[%s462 + $0x41] sm:$0xff]
      %v1483 = vld [vmem:[%s462 + $0x51] sm:$0xff]
      %v1484 = vld [vmem:[%s462 + $0x61] sm:$0xff]
      %v1485 = vld [vmem:[%s462 + $0x71] sm:$0xff]
      %v1486 = vld [vmem:[%s487 + $0x1] sm:$0xff]
      %v1487 = vld [vmem:[%s487 + $0x11] sm:$0xff]
      %v1488 = vld [vmem:[%s487 + $0x21] sm:$0xff]
      %v1489 = vld [vmem:[%s487 + $0x31] sm:$0xff]
      %v1490 = vld [vmem:[%s487 + $0x41] sm:$0xff]
      %v1491 = vld [vmem:[%s487 + $0x51] sm:$0xff]
      %v1492 = vld [vmem:[%s487 + $0x61] sm:$0xff]
      %v1493 = vld [vmem:[%s487 + $0x71] sm:$0xff]
      %1502 = vrot.lane.b32.xlu0 %v1478, 8
      %v1503 = vpop.permute.xlu0 %1502
      %1504 = vrot.lane.b32.xlu0 %v1479, 8
      %v1505 = vpop.permute.xlu0 %1504
      %1506 = vrot.lane.b32.xlu0 %v1480, 8
      %v1507 = vpop.permute.xlu0 %1506
      %1508 = vrot.lane.b32.xlu0 %v1481, 8
      %v1509 = vpop.permute.xlu0 %1508
      %1510 = vrot.lane.b32.xlu0 %v1482, 8
      %v1511 = vpop.permute.xlu0 %1510
      %1512 = vrot.lane.b32.xlu0 %v1483, 8
      %v1513 = vpop.permute.xlu0 %1512
      %1514 = vrot.lane.b32.xlu0 %v1484, 8
      %v1515 = vpop.permute.xlu0 %1514
      %1516 = vrot.lane.b32.xlu0 %v1485, 8
      %v1517 = vpop.permute.xlu0 %1516
      %1534 = vrot.lane.b32.xlu0 %v1486, 16
      %v1535 = vpop.permute.xlu0 %1534
      %1536 = vrot.lane.b32.xlu0 %v1487, 16
      %v1537 = vpop.permute.xlu0 %1536
      %1538 = vrot.lane.b32.xlu0 %v1488, 16
      %v1539 = vpop.permute.xlu0 %1538
      %1540 = vrot.lane.b32.xlu0 %v1489, 16
      %v1541 = vpop.permute.xlu0 %1540
      %1542 = vrot.lane.b32.xlu0 %v1490, 16
      %v1543 = vpop.permute.xlu0 %1542
      %1544 = vrot.lane.b32.xlu0 %v1491, 16
      %v1545 = vpop.permute.xlu0 %1544
      %1546 = vrot.lane.b32.xlu0 %v1492, 16
      %v1547 = vpop.permute.xlu0 %1546
      %1548 = vrot.lane.b32.xlu0 %v1493, 16
      %v1549 = vpop.permute.xlu0 %1548
      %v1558 = vsel %vm432, %v1470, %v1503
      %v1559 = vsel %vm432, %v1471, %v1505
      %v1560 = vsel %vm432, %v1472, %v1507
      %v1561 = vsel %vm432, %v1473, %v1509
      %v1562 = vsel %vm432, %v1474, %v1511
      %v1563 = vsel %vm432, %v1475, %v1513
      %v1564 = vsel %vm432, %v1476, %v1515
      %v1565 = vsel %vm432, %v1477, %v1517
      %v1566 = vsel %vm568, %v1558, %v1535
      %v1567 = vsel %vm568, %v1559, %v1537
      %v1568 = vsel %vm568, %v1560, %v1539
      %v1569 = vsel %vm568, %v1561, %v1541
      %v1570 = vsel %vm568, %v1562, %v1543
      %v1571 = vsel %vm568, %v1563, %v1545
      %v1572 = vsel %vm568, %v1564, %v1547
      %v1573 = vsel %vm568, %v1565, %v1549
      %v1574 = vpack.c.bf16 %v1567, %v1566
      %v1575 = vpack.c.bf16 %v1569, %v1568
      %v1576 = vpack.c.bf16 %v1571, %v1570
      %v1577 = vpack.c.bf16 %v1573, %v1572
      %s1578 = scalar_lea.vmem %s3, 48
      %v1579 = vld [vmem:[%s1578] sm:$0xf]
      %v1580 = vld [vmem:[%s1578 + $0x4] sm:$0xf]
      %v1581 = vld [vmem:[%s1578 + $0x8] sm:$0xf]
      %v1585 = vunpack.c.l.b16 %v1579
      %v1586 = vunpack.c.l.b16 %v1580
      %v1587 = vunpack.c.l.b16 %v1581
      %v1588 = vpack.c.b16 %v1586, %v1585
      %v1589 = vpack.c.b16 %v1587, %v1587
      %v1592 = vsel %vm705, %v1574, 0
      %v1595 = vsel %vm705, %v1575, 0
      %v1598 = vsel %vm705, %v1576, 0
      %v1601 = vsel %vm705, %v1577, 0
      %v1604 = vsel %vm718, %v1589, 0
      %1606 = vmatpush.bf16.msra.mxu0 0
      %1607 = vmatpush.bf16.msra.mxu0 0
      %1608 = vmatpush.bf16.msra.mxu0 0
      %1609 = vmatpush.bf16.msra.mxu0 0
      %1610 = vmatpush.bf16.msra.mxu0 0
      %1611 = vmatpush.bf16.msra.mxu0 0
      %1612 = vmatpush.bf16.msra.mxu0 %v1604
      %1613 = vmatpush.bf16.msra.mxu0 %v1588
      %1614 = vmatmul.bf16.gmra.mxu0 %v1592
      %v1615 = vpop.f32.mrf.mxu0
      %v1616 = vadd.f32 0.0, %v1615
      %v1617 = vpop.f32.mrf.mxu0
      %v1618 = vadd.f32 0.0, %v1617
      %1619 = vmatmul.bf16.gmra.mxu0 %v1595
      %v1620 = vpop.f32.mrf.mxu0
      %v1621 = vadd.f32 0.0, %v1620
      %v1622 = vpop.f32.mrf.mxu0
      %v1623 = vadd.f32 0.0, %v1622
      %1624 = vmatmul.bf16.gmra.mxu0 %v1598
      %v1625 = vpop.f32.mrf.mxu0
      %v1626 = vadd.f32 0.0, %v1625
      %v1627 = vpop.f32.mrf.mxu0
      %v1628 = vadd.f32 0.0, %v1627
      %1629 = vmatmul.bf16.gmra.mxu0 %v1601
      %v1630 = vpop.f32.mrf.mxu0
      %v1631 = vadd.f32 0.0, %v1630
      %v1632 = vpop.f32.mrf.mxu0
      %v1633 = vadd.f32 0.0, %v1632
      %1634 = vdwg.mxu0
      %v1638 = vunpack.c.l.b16 %v1467
      %v1639 = vunpack.c.l.b16 %v1468
      %v1640 = vunpack.c.l.b16 %v1469
      %v1641 = vpack.c.b16 %v1639, %v1638
      %v1642 = vpack.c.b16 %v1640, %v1640
      %v1645 = vsel %vm705, %v1462, 0
      %v1648 = vsel %vm705, %v1463, 0
      %v1651 = vsel %vm705, %v1464, 0
      %v1654 = vsel %vm705, %v1465, 0
      %v1657 = vsel %vm718, %v1642, 0
      %1659 = vmatpush.bf16.msra.mxu0 0
      %1660 = vmatpush.bf16.msra.mxu0 0
      %1661 = vmatpush.bf16.msra.mxu0 0
      %1662 = vmatpush.bf16.msra.mxu0 0
      %1663 = vmatpush.bf16.msra.mxu0 0
      %1664 = vmatpush.bf16.msra.mxu0 0
      %1665 = vmatpush.bf16.msra.mxu0 %v1657
      %1666 = vmatpush.bf16.msra.mxu0 %v1641
      %1667 = vmatmul.bf16.gmra.mxu0 %v1645
      %v1668 = vpop.f32.mrf.mxu0
      %v1669 = vadd.f32 %v1616, %v1668
      %v1670 = vpop.f32.mrf.mxu0
      %v1671 = vadd.f32 %v1618, %v1670
      %1672 = vmatmul.bf16.gmra.mxu0 %v1648
      %v1673 = vpop.f32.mrf.mxu0
      %v1674 = vadd.f32 %v1621, %v1673
      %v1675 = vpop.f32.mrf.mxu0
      %v1676 = vadd.f32 %v1623, %v1675
      %1677 = vmatmul.bf16.gmra.mxu0 %v1651
      %v1678 = vpop.f32.mrf.mxu0
      %v1679 = vadd.f32 %v1626, %v1678
      %v1680 = vpop.f32.mrf.mxu0
      %v1681 = vadd.f32 %v1628, %v1680
      %1682 = vmatmul.bf16.gmra.mxu0 %v1654
      %v1683 = vpop.f32.mrf.mxu0
      %v1684 = vadd.f32 %v1631, %v1683
      %v1685 = vpop.f32.mrf.mxu0
      %v1686 = vadd.f32 %v1633, %v1685
      %1687 = vdwg.mxu0
      %v1688 = vld [vmem:[#allocation2 + $0x2] sm:$0xff]
      %v1689 = vld [vmem:[#allocation2 + $0x12] sm:$0xff]
      %v1690 = vld [vmem:[#allocation2 + $0x22] sm:$0xff]
      %v1691 = vld [vmem:[#allocation2 + $0x32] sm:$0xff]
      %v1692 = vld [vmem:[#allocation2 + $0x42] sm:$0xff]
      %v1693 = vld [vmem:[#allocation2 + $0x52] sm:$0xff]
      %v1694 = vld [vmem:[#allocation2 + $0x62] sm:$0xff]
      %v1695 = vld [vmem:[#allocation2 + $0x72] sm:$0xff]
      %v1696 = vld [vmem:[%s462 + $0x2] sm:$0xff]
      %v1697 = vld [vmem:[%s462 + $0x12] sm:$0xff]
      %v1698 = vld [vmem:[%s462 + $0x22] sm:$0xff]
      %v1699 = vld [vmem:[%s462 + $0x32] sm:$0xff]
      %v1700 = vld [vmem:[%s462 + $0x42] sm:$0xff]
      %v1701 = vld [vmem:[%s462 + $0x52] sm:$0xff]
      %v1702 = vld [vmem:[%s462 + $0x62] sm:$0xff]
      %v1703 = vld [vmem:[%s462 + $0x72] sm:$0xff]
      %v1704 = vld [vmem:[%s487 + $0x2] sm:$0xff]
      %v1705 = vld [vmem:[%s487 + $0x12] sm:$0xff]
      %v1706 = vld [vmem:[%s487 + $0x22] sm:$0xff]
      %v1707 = vld [vmem:[%s487 + $0x32] sm:$0xff]
      %v1708 = vld [vmem:[%s487 + $0x42] sm:$0xff]
      %v1709 = vld [vmem:[%s487 + $0x52] sm:$0xff]
      %v1710 = vld [vmem:[%s487 + $0x62] sm:$0xff]
      %v1711 = vld [vmem:[%s487 + $0x72] sm:$0xff]
      %1720 = vrot.lane.b32.xlu0 %v1696, 8
      %v1721 = vpop.permute.xlu0 %1720
      %1722 = vrot.lane.b32.xlu0 %v1697, 8
      %v1723 = vpop.permute.xlu0 %1722
      %1724 = vrot.lane.b32.xlu0 %v1698, 8
      %v1725 = vpop.permute.xlu0 %1724
      %1726 = vrot.lane.b32.xlu0 %v1699, 8
      %v1727 = vpop.permute.xlu0 %1726
      %1728 = vrot.lane.b32.xlu0 %v1700, 8
      %v1729 = vpop.permute.xlu0 %1728
      %1730 = vrot.lane.b32.xlu0 %v1701, 8
      %v1731 = vpop.permute.xlu0 %1730
      %1732 = vrot.lane.b32.xlu0 %v1702, 8
      %v1733 = vpop.permute.xlu0 %1732
      %1734 = vrot.lane.b32.xlu0 %v1703, 8
      %v1735 = vpop.permute.xlu0 %1734
      %1752 = vrot.lane.b32.xlu0 %v1704, 16
      %v1753 = vpop.permute.xlu0 %1752
      %1754 = vrot.lane.b32.xlu0 %v1705, 16
      %v1755 = vpop.permute.xlu0 %1754
      %1756 = vrot.lane.b32.xlu0 %v1706, 16
      %v1757 = vpop.permute.xlu0 %1756
      %1758 = vrot.lane.b32.xlu0 %v1707, 16
      %v1759 = vpop.permute.xlu0 %1758
      %1760 = vrot.lane.b32.xlu0 %v1708, 16
      %v1761 = vpop.permute.xlu0 %1760
      %1762 = vrot.lane.b32.xlu0 %v1709, 16
      %v1763 = vpop.permute.xlu0 %1762
      %1764 = vrot.lane.b32.xlu0 %v1710, 16
      %v1765 = vpop.permute.xlu0 %1764
      %1766 = vrot.lane.b32.xlu0 %v1711, 16
      %v1767 = vpop.permute.xlu0 %1766
      %v1776 = vsel %vm432, %v1688, %v1721
      %v1777 = vsel %vm432, %v1689, %v1723
      %v1778 = vsel %vm432, %v1690, %v1725
      %v1779 = vsel %vm432, %v1691, %v1727
      %v1780 = vsel %vm432, %v1692, %v1729
      %v1781 = vsel %vm432, %v1693, %v1731
      %v1782 = vsel %vm432, %v1694, %v1733
      %v1783 = vsel %vm432, %v1695, %v1735
      %v1784 = vsel %vm568, %v1776, %v1753
      %v1785 = vsel %vm568, %v1777, %v1755
      %v1786 = vsel %vm568, %v1778, %v1757
      %v1787 = vsel %vm568, %v1779, %v1759
      %v1788 = vsel %vm568, %v1780, %v1761
      %v1789 = vsel %vm568, %v1781, %v1763
      %v1790 = vsel %vm568, %v1782, %v1765
      %v1791 = vsel %vm568, %v1783, %v1767
      %v1792 = vpack.c.bf16 %v1785, %v1784
      %v1793 = vpack.c.bf16 %v1787, %v1786
      %v1794 = vpack.c.bf16 %v1789, %v1788
      %v1795 = vpack.c.bf16 %v1791, %v1790
      %s1796 = scalar_lea.vmem %s3, 60
      %v1797 = vld [vmem:[%s1796] sm:$0xf]
      %v1798 = vld [vmem:[%s1796 + $0x4] sm:$0xf]
      %v1799 = vld [vmem:[%s1796 + $0x8] sm:$0xf]
      %v1803 = vunpack.c.l.b16 %v1797
      %v1804 = vunpack.c.l.b16 %v1798
      %v1805 = vunpack.c.l.b16 %v1799
      %v1806 = vpack.c.b16 %v1804, %v1803
      %v1807 = vpack.c.b16 %v1805, %v1805
      %v1810 = vsel %vm705, %v1792, 0
      %v1813 = vsel %vm705, %v1793, 0
      %v1816 = vsel %vm705, %v1794, 0
      %v1819 = vsel %vm705, %v1795, 0
      %v1822 = vsel %vm718, %v1807, 0
      %1824 = vmatpush.bf16.msra.mxu0 0
      %1825 = vmatpush.bf16.msra.mxu0 0
      %1826 = vmatpush.bf16.msra.mxu0 0
      %1827 = vmatpush.bf16.msra.mxu0 0
      %1828 = vmatpush.bf16.msra.mxu0 0
      %1829 = vmatpush.bf16.msra.mxu0 0
      %1830 = vmatpush.bf16.msra.mxu0 %v1822
      %1831 = vmatpush.bf16.msra.mxu0 %v1806
      %1832 = vmatmul.bf16.gmra.mxu0 %v1810
      %v1833 = vpop.f32.mrf.mxu0
      %v1834 = vadd.f32 0.0, %v1833
      %v1835 = vpop.f32.mrf.mxu0
      %v1836 = vadd.f32 0.0, %v1835
      %1837 = vmatmul.bf16.gmra.mxu0 %v1813
      %v1838 = vpop.f32.mrf.mxu0
      %v1839 = vadd.f32 0.0, %v1838
      %v1840 = vpop.f32.mrf.mxu0
      %v1841 = vadd.f32 0.0, %v1840
      %1842 = vmatmul.bf16.gmra.mxu0 %v1816
      %v1843 = vpop.f32.mrf.mxu0
      %v1844 = vadd.f32 0.0, %v1843
      %v1845 = vpop.f32.mrf.mxu0
      %v1846 = vadd.f32 0.0, %v1845
      %1847 = vmatmul.bf16.gmra.mxu0 %v1819
      %v1848 = vpop.f32.mrf.mxu0
      %v1849 = vadd.f32 0.0, %v1848
      %v1850 = vpop.f32.mrf.mxu0
      %v1851 = vadd.f32 0.0, %v1850
      %1852 = vdwg.mxu0
      %v1853 = vadd.f32 %v1669, %v1834
      %v1854 = vadd.f32 %v1671, %v1836
      %v1855 = vadd.f32 %v1674, %v1839
      %v1856 = vadd.f32 %v1676, %v1841
      %v1857 = vadd.f32 %v1679, %v1844
      %v1858 = vadd.f32 %v1681, %v1846
      %v1859 = vadd.f32 %v1684, %v1849
      %v1860 = vadd.f32 %v1686, %v1851
      %s1861 = scalar_lea.vmem %s4, 1
      %v1862 = vld [vmem:[%s1861] sm:$0x1]
      %v1864 = vperm.slane %v1862, 0
      %v1866 = vadd.f32 %v1853, %v1864
      %v1867 = vadd.f32 %v1854, %v1864
      %v1868 = vadd.f32 %v1855, %v1864
      %v1869 = vadd.f32 %v1856, %v1864
      %v1870 = vadd.f32 %v1857, %v1864
      %v1871 = vadd.f32 %v1858, %v1864
      %v1872 = vadd.f32 %v1859, %v1864
      %v1873 = vadd.f32 %v1860, %v1864
      %v1874 = vsel %vm432, %v1866, 0.0
      %v1875 = vsel %vm432, %v1867, 0.0
      %v1876 = vadd.f32 %v1874, %v1875
      %v1877 = vsel %vm432, %v1868, 0.0
      %v1878 = vadd.f32 %v1876, %v1877
      %v1879 = vsel %vm432, %v1869, 0.0
      %v1880 = vadd.f32 %v1878, %v1879
      %v1881 = vsel %vm432, %v1870, 0.0
      %v1882 = vadd.f32 %v1880, %v1881
      %v1883 = vsel %vm432, %v1871, 0.0
      %v1884 = vadd.f32 %v1882, %v1883
      %v1885 = vsel %vm432, %v1872, 0.0
      %v1886 = vadd.f32 %v1884, %v1885
      %v1887 = vsel %vm432, %v1873, 0.0
      %v1888 = vadd.f32 %v1886, %v1887
      %v1889 = vrot.slane %v1888, 4
      %v1890 = vadd.f32 %v1888, %v1889
      %v1891 = vrot.slane %v1890, 2
      %v1892 = vadd.f32 %v1890, %v1891
      %v1893 = vrot.slane %v1892, 1
      %v1894 = vadd.f32 %v1892, %v1893
      %v1896 = vsel %vm432, %v1894, 0
      %1898 = vmatpush.msra.mxu0 0.0
      %1899 = vmatpush.msra.mxu0 0.0
      %1900 = vmatpush.msra.mxu0 0.0
      %1901 = vmatpush.msra.mxu0 0.0
      %1902 = vmatpush.msra.mxu0 0.0
      %1903 = vmatpush.msra.mxu0 0.0
      %1904 = vmatpush.msra.mxu0 0.0
      %1905 = vmatpush.msra.mxu0 0.0
      %1906 = vmatpush.msra.mxu0 0.0
      %1907 = vmatpush.msra.mxu0 0.0
      %1908 = vmatpush.msra.mxu0 0.0
      %1909 = vmatpush.msra.mxu0 0.0
      %1910 = vmatpush.msra.mxu0 0.0
      %1911 = vmatpush.msra.mxu0 0.0
      %1912 = vmatpush.msra.mxu0 0.0
      %1913 = vmatpush.msra.mxu0 %v460
      %1914 = vmatmul.f32.gmra.mxu0 %v1896
      %v1915 = vpop.f32.mrf.mxu0
      %v1916 = vadd.f32 0.0, %v1915
      %1917 = vdwg.mxu0
      %v1918 = vmul.f32 %v1916, 0.00390625
      %v1920 = vsel %vm1034, %v1918, 0
      %1922 = vmatpush.msra.mxu0 0.0
      %1923 = vmatpush.msra.mxu0 0.0
      %1924 = vmatpush.msra.mxu0 0.0
      %1925 = vmatpush.msra.mxu0 0.0
      %1926 = vmatpush.msra.mxu0 0.0
      %1927 = vmatpush.msra.mxu0 0.0
      %1928 = vmatpush.msra.mxu0 0.0
      %1929 = vmatpush.msra.mxu0 0.0
      %1930 = vmatpush.msra.mxu0 0.0
      %1931 = vmatpush.msra.mxu0 0.0
      %1932 = vmatpush.msra.mxu0 0.0
      %1933 = vmatpush.msra.mxu0 0.0
      %1934 = vmatpush.msra.mxu0 0.0
      %1935 = vmatpush.msra.mxu0 0.0
      %1936 = vmatpush.msra.mxu0 0.0
      %1937 = vmatpush.msra.mxu0 %v1039
      %1938 = vmatmul.f32.gmra.mxu0 %v1920
      %v1939 = vpop.f32.mrf.mxu0
      %v1940 = vadd.f32 0.0, %v1939
      %1941 = vdwg.mxu0
      %v1942 = vperm.slane %v1940, 0
      %v1943 = vsub.f32 %v1866, %v1942
      %v1944 = vsub.f32 %v1867, %v1942
      %v1945 = vsub.f32 %v1868, %v1942
      %v1946 = vsub.f32 %v1869, %v1942
      %v1947 = vsub.f32 %v1870, %v1942
      %v1948 = vsub.f32 %v1871, %v1942
      %v1949 = vsub.f32 %v1872, %v1942
      %v1950 = vsub.f32 %v1873, %v1942
      %v1951 = vmul.f32 %v1943, %v1943
      %v1952 = vmul.f32 %v1944, %v1944
      %v1953 = vmul.f32 %v1945, %v1945
      %v1954 = vmul.f32 %v1946, %v1946
      %v1955 = vmul.f32 %v1947, %v1947
      %v1956 = vmul.f32 %v1948, %v1948
      %v1957 = vmul.f32 %v1949, %v1949
      %v1958 = vmul.f32 %v1950, %v1950
      %v1959 = vsel %vm432, %v1951, 0.0
      %v1960 = vsel %vm432, %v1952, 0.0
      %v1961 = vadd.f32 %v1959, %v1960
      %v1962 = vsel %vm432, %v1953, 0.0
      %v1963 = vadd.f32 %v1961, %v1962
      %v1964 = vsel %vm432, %v1954, 0.0
      %v1965 = vadd.f32 %v1963, %v1964
      %v1966 = vsel %vm432, %v1955, 0.0
      %v1967 = vadd.f32 %v1965, %v1966
      %v1968 = vsel %vm432, %v1956, 0.0
      %v1969 = vadd.f32 %v1967, %v1968
      %v1970 = vsel %vm432, %v1957, 0.0
      %v1971 = vadd.f32 %v1969, %v1970
      %v1972 = vsel %vm432, %v1958, 0.0
      %v1973 = vadd.f32 %v1971, %v1972
      %v1974 = vrot.slane %v1973, 4
      %v1975 = vadd.f32 %v1973, %v1974
      %v1976 = vrot.slane %v1975, 2
      %v1977 = vadd.f32 %v1975, %v1976
      %v1978 = vrot.slane %v1977, 1
      %v1979 = vadd.f32 %v1977, %v1978
      %v1981 = vsel %vm432, %v1979, 0
      %1983 = vmatpush.msra.mxu0 0.0
      %1984 = vmatpush.msra.mxu0 0.0
      %1985 = vmatpush.msra.mxu0 0.0
      %1986 = vmatpush.msra.mxu0 0.0
      %1987 = vmatpush.msra.mxu0 0.0
      %1988 = vmatpush.msra.mxu0 0.0
      %1989 = vmatpush.msra.mxu0 0.0
      %1990 = vmatpush.msra.mxu0 0.0
      %1991 = vmatpush.msra.mxu0 0.0
      %1992 = vmatpush.msra.mxu0 0.0
      %1993 = vmatpush.msra.mxu0 0.0
      %1994 = vmatpush.msra.mxu0 0.0
      %1995 = vmatpush.msra.mxu0 0.0
      %1996 = vmatpush.msra.mxu0 0.0
      %1997 = vmatpush.msra.mxu0 0.0
      %1998 = vmatpush.msra.mxu0 %v460
      %1999 = vmatmul.f32.gmra.mxu0 %v1981
      %v2000 = vpop.f32.mrf.mxu0
      %v2001 = vadd.f32 0.0, %v2000
      %2002 = vdwg.mxu0
      %v2003 = vmul.f32 %v2001, 0.00390625
      %v2004 = vadd.f32 %v2003, 1e-05
      %v2005 = vrsqrt.pop %v2004
      %v2006 = vmul.f32 %v2005, %v2004
      %v2007 = vmul.f32 %v2006, %v2005
      %v2008 = vmul.f32 0.5, %v2007
      %v2009 = vsub.f32 1.5, %v2008
      %v2010 = vmul.f32 %v2005, %v2009
      %vm2011 = vweird.f32 %v2004
      %vm2012 = vweird.f32 %v2005
      %vm2013 = vmor %vm2011, %vm2012
      %v2014 = vsel %vm2013, %v2005, %v2010
      %v2016 = vsel %vm1034, %v2014, 0
      %2018 = vmatpush.msra.mxu0 0.0
      %2019 = vmatpush.msra.mxu0 0.0
      %2020 = vmatpush.msra.mxu0 0.0
      %2021 = vmatpush.msra.mxu0 0.0
      %2022 = vmatpush.msra.mxu0 0.0
      %2023 = vmatpush.msra.mxu0 0.0
      %2024 = vmatpush.msra.mxu0 0.0
      %2025 = vmatpush.msra.mxu0 0.0
      %2026 = vmatpush.msra.mxu0 0.0
      %2027 = vmatpush.msra.mxu0 0.0
      %2028 = vmatpush.msra.mxu0 0.0
      %2029 = vmatpush.msra.mxu0 0.0
      %2030 = vmatpush.msra.mxu0 0.0
      %2031 = vmatpush.msra.mxu0 0.0
      %2032 = vmatpush.msra.mxu0 0.0
      %2033 = vmatpush.msra.mxu0 %v1039
      %2034 = vmatmul.f32.gmra.mxu0 %v2016
      %v2035 = vpop.f32.mrf.mxu0
      %v2036 = vadd.f32 0.0, %v2035
      %2037 = vdwg.mxu0
      %v2038 = vperm.slane %v2036, 0
      %v2039 = vmul.f32 %v1943, %v2038
      %v2040 = vmul.f32 %v1944, %v2038
      %v2041 = vmul.f32 %v1945, %v2038
      %v2042 = vmul.f32 %v1946, %v2038
      %v2043 = vmul.f32 %v1947, %v2038
      %v2044 = vmul.f32 %v1948, %v2038
      %v2045 = vmul.f32 %v1949, %v2038
      %v2046 = vmul.f32 %v1950, %v2038
      %s2047 = scalar_lea.vmem %s5, 1
      %v2048 = vld [vmem:[%s2047] sm:$0x1]
      %v2050 = vperm.slane %v2048, 0
      %v2052 = vmul.f32 %v2039, %v2050
      %v2053 = vmul.f32 %v2040, %v2050
      %v2054 = vmul.f32 %v2041, %v2050
      %v2055 = vmul.f32 %v2042, %v2050
      %v2056 = vmul.f32 %v2043, %v2050
      %v2057 = vmul.f32 %v2044, %v2050
      %v2058 = vmul.f32 %v2045, %v2050
      %v2059 = vmul.f32 %v2046, %v2050
      %s2060 = scalar_lea.vmem %s6, 1
      %v2061 = vld [vmem:[%s2060] sm:$0x1]
      %v2063 = vperm.slane %v2061, 0
      %v2065 = vadd.f32 %v2052, %v2063
      %v2066 = vadd.f32 %v2053, %v2063
      %v2067 = vadd.f32 %v2054, %v2063
      %v2068 = vadd.f32 %v2055, %v2063
      %v2069 = vadd.f32 %v2056, %v2063
      %v2070 = vadd.f32 %v2057, %v2063
      %v2071 = vadd.f32 %v2058, %v2063
      %v2072 = vadd.f32 %v2059, %v2063
      %v2073 = vxor.u32 %v2065, 2147483648
      %v2074 = vxor.u32 %v2066, 2147483648
      %v2075 = vxor.u32 %v2067, 2147483648
      %v2076 = vxor.u32 %v2068, 2147483648
      %v2077 = vxor.u32 %v2069, 2147483648
      %v2078 = vxor.u32 %v2070, 2147483648
      %v2079 = vxor.u32 %v2071, 2147483648
      %v2080 = vxor.u32 %v2072, 2147483648
      %v2081 = vmul.f32 %v2073, 1.442695
      %v2082 = vpow.pop %v2081
      %v2083 = vmul.f32 %v2074, 1.442695
      %v2084 = vpow.pop %v2083
      %v2085 = vmul.f32 %v2075, 1.442695
      %v2086 = vpow.pop %v2085
      %v2087 = vmul.f32 %v2076, 1.442695
      %v2088 = vpow.pop %v2087
      %v2089 = vmul.f32 %v2077, 1.442695
      %v2090 = vpow.pop %v2089
      %v2091 = vmul.f32 %v2078, 1.442695
      %v2092 = vpow.pop %v2091
      %v2093 = vmul.f32 %v2079, 1.442695
      %v2094 = vpow.pop %v2093
      %v2095 = vmul.f32 %v2080, 1.442695
      %v2096 = vpow.pop %v2095
      %v2097 = vadd.f32 %v2082, 1.0
      %v2098 = vadd.f32 %v2084, 1.0
      %v2099 = vadd.f32 %v2086, 1.0
      %v2100 = vadd.f32 %v2088, 1.0
      %v2101 = vadd.f32 %v2090, 1.0
      %v2102 = vadd.f32 %v2092, 1.0
      %v2103 = vadd.f32 %v2094, 1.0
      %v2104 = vadd.f32 %v2096, 1.0
      %v2105 = vrcp.pop %v2097
      %v2106 = vmul.f32 %v2097, %v2105
      %v2107 = vsub.f32 1.0, %v2106
      %v2108 = vmul.f32 %v2105, %v2107
      %v2109 = vadd.f32 %v2105, %v2108
      %vm2110 = vweird.f32 %v2097
      %vm2111 = vweird.f32 %v2105
      %vm2112 = vmor %vm2110, %vm2111
      %v2113 = vsel %vm2112, %v2105, %v2109
      %v2114 = vand.u32 2147483647, %v2097
      %vm2115 = vcmp.eq.f32.partialorder %v2114, 8.507059e+37
      %v2116 = vand.u32 %v2097, 2147483648
      %v2117 = vor.u32 1.1754944e-38, %v2116
      %v2118 = vsel %vm2115, %v2117, %v2113
      %v2119 = vmul.f32 1.0, %v2118
      %v2120 = vrcp.pop %v2098
      %v2121 = vmul.f32 %v2098, %v2120
      %v2122 = vsub.f32 1.0, %v2121
      %v2123 = vmul.f32 %v2120, %v2122
      %v2124 = vadd.f32 %v2120, %v2123
      %vm2125 = vweird.f32 %v2098
      %vm2126 = vweird.f32 %v2120
      %vm2127 = vmor %vm2125, %vm2126
      %v2128 = vsel %vm2127, %v2120, %v2124
      %v2129 = vand.u32 2147483647, %v2098
      %vm2130 = vcmp.eq.f32.partialorder %v2129, 8.507059e+37
      %v2131 = vand.u32 %v2098, 2147483648
      %v2132 = vor.u32 1.1754944e-38, %v2131
      %v2133 = vsel %vm2130, %v2132, %v2128
      %v2134 = vmul.f32 1.0, %v2133
      %v2135 = vrcp.pop %v2099
      %v2136 = vmul.f32 %v2099, %v2135
      %v2137 = vsub.f32 1.0, %v2136
      %v2138 = vmul.f32 %v2135, %v2137
      %v2139 = vadd.f32 %v2135, %v2138
      %vm2140 = vweird.f32 %v2099
      %vm2141 = vweird.f32 %v2135
      %vm2142 = vmor %vm2140, %vm2141
      %v2143 = vsel %vm2142, %v2135, %v2139
      %v2144 = vand.u32 2147483647, %v2099
      %vm2145 = vcmp.eq.f32.partialorder %v2144, 8.507059e+37
      %v2146 = vand.u32 %v2099, 2147483648
      %v2147 = vor.u32 1.1754944e-38, %v2146
      %v2148 = vsel %vm2145, %v2147, %v2143
      %v2149 = vmul.f32 1.0, %v2148
      %v2150 = vrcp.pop %v2100
      %v2151 = vmul.f32 %v2100, %v2150
      %v2152 = vsub.f32 1.0, %v2151
      %v2153 = vmul.f32 %v2150, %v2152
      %v2154 = vadd.f32 %v2150, %v2153
      %vm2155 = vweird.f32 %v2100
      %vm2156 = vweird.f32 %v2150
      %vm2157 = vmor %vm2155, %vm2156
      %v2158 = vsel %vm2157, %v2150, %v2154
      %v2159 = vand.u32 2147483647, %v2100
      %vm2160 = vcmp.eq.f32.partialorder %v2159, 8.507059e+37
      %v2161 = vand.u32 %v2100, 2147483648
      %v2162 = vor.u32 1.1754944e-38, %v2161
      %v2163 = vsel %vm2160, %v2162, %v2158
      %v2164 = vmul.f32 1.0, %v2163
      %v2165 = vrcp.pop %v2101
      %v2166 = vmul.f32 %v2101, %v2165
      %v2167 = vsub.f32 1.0, %v2166
      %v2168 = vmul.f32 %v2165, %v2167
      %v2169 = vadd.f32 %v2165, %v2168
      %vm2170 = vweird.f32 %v2101
      %vm2171 = vweird.f32 %v2165
      %vm2172 = vmor %vm2170, %vm2171
      %v2173 = vsel %vm2172, %v2165, %v2169
      %v2174 = vand.u32 2147483647, %v2101
      %vm2175 = vcmp.eq.f32.partialorder %v2174, 8.507059e+37
      %v2176 = vand.u32 %v2101, 2147483648
      %v2177 = vor.u32 1.1754944e-38, %v2176
      %v2178 = vsel %vm2175, %v2177, %v2173
      %v2179 = vmul.f32 1.0, %v2178
      %v2180 = vrcp.pop %v2102
      %v2181 = vmul.f32 %v2102, %v2180
      %v2182 = vsub.f32 1.0, %v2181
      %v2183 = vmul.f32 %v2180, %v2182
      %v2184 = vadd.f32 %v2180, %v2183
      %vm2185 = vweird.f32 %v2102
      %vm2186 = vweird.f32 %v2180
      %vm2187 = vmor %vm2185, %vm2186
      %v2188 = vsel %vm2187, %v2180, %v2184
      %v2189 = vand.u32 2147483647, %v2102
      %vm2190 = vcmp.eq.f32.partialorder %v2189, 8.507059e+37
      %v2191 = vand.u32 %v2102, 2147483648
      %v2192 = vor.u32 1.1754944e-38, %v2191
      %v2193 = vsel %vm2190, %v2192, %v2188
      %v2194 = vmul.f32 1.0, %v2193
      %v2195 = vrcp.pop %v2103
      %v2196 = vmul.f32 %v2103, %v2195
      %v2197 = vsub.f32 1.0, %v2196
      %v2198 = vmul.f32 %v2195, %v2197
      %v2199 = vadd.f32 %v2195, %v2198
      %vm2200 = vweird.f32 %v2103
      %vm2201 = vweird.f32 %v2195
      %vm2202 = vmor %vm2200, %vm2201
      %v2203 = vsel %vm2202, %v2195, %v2199
      %v2204 = vand.u32 2147483647, %v2103
      %vm2205 = vcmp.eq.f32.partialorder %v2204, 8.507059e+37
      %v2206 = vand.u32 %v2103, 2147483648
      %v2207 = vor.u32 1.1754944e-38, %v2206
      %v2208 = vsel %vm2205, %v2207, %v2203
      %v2209 = vmul.f32 1.0, %v2208
      %v2210 = vrcp.pop %v2104
      %v2211 = vmul.f32 %v2104, %v2210
      %v2212 = vsub.f32 1.0, %v2211
      %v2213 = vmul.f32 %v2210, %v2212
      %v2214 = vadd.f32 %v2210, %v2213
      %vm2215 = vweird.f32 %v2104
      %vm2216 = vweird.f32 %v2210
      %vm2217 = vmor %vm2215, %vm2216
      %v2218 = vsel %vm2217, %v2210, %v2214
      %v2219 = vand.u32 2147483647, %v2104
      %vm2220 = vcmp.eq.f32.partialorder %v2219, 8.507059e+37
      %v2221 = vand.u32 %v2104, 2147483648
      %v2222 = vor.u32 1.1754944e-38, %v2221
      %v2223 = vsel %vm2220, %v2222, %v2218
      %v2224 = vmul.f32 1.0, %v2223
      %v2225 = vmul.f32 %v2065, %v2119
      %v2226 = vmul.f32 %v2066, %v2134
      %v2227 = vmul.f32 %v2067, %v2149
      %v2228 = vmul.f32 %v2068, %v2164
      %v2229 = vmul.f32 %v2069, %v2179
      %v2230 = vmul.f32 %v2070, %v2194
      %v2231 = vmul.f32 %v2071, %v2209
      %v2232 = vmul.f32 %v2072, %v2224
      %v2233 = vadd.f32 %v2225, %v413
      %v2234 = vadd.f32 %v2226, %v415
      %v2235 = vadd.f32 %v2227, %v418
      %v2236 = vadd.f32 %v2228, %v420
      %v2237 = vadd.f32 %v2229, %v423
      %v2238 = vadd.f32 %v2230, %v425
      %v2239 = vadd.f32 %v2231, %v428
      %v2240 = vadd.f32 %v2232, %v430
      %2241 = vst.msk [vmem:[%s332] sm:$0xff] %vm432, %v2233
      %2242 = vst.msk [vmem:[%s332 + $0x8] sm:$0xff] %vm432, %v2234
      %2243 = vst.msk [vmem:[%s332 + $0x10] sm:$0xff] %vm432, %v2235
      %2244 = vst.msk [vmem:[%s332 + $0x18] sm:$0xff] %vm432, %v2236
      %2245 = vst.msk [vmem:[%s332 + $0x20] sm:$0xff] %vm432, %v2237
      %2246 = vst.msk [vmem:[%s332 + $0x28] sm:$0xff] %vm432, %v2238
      %2247 = vst.msk [vmem:[%s332 + $0x30] sm:$0xff] %vm432, %v2239
      %2248 = vst.msk [vmem:[%s332 + $0x38] sm:$0xff] %vm432, %v2240
      %p2249 = scmp.lt.s32.totalorder %s20, 1
      %s2250 = scalar_select %p2249, %s20, 1
      %s2251 = smul.addr %s2250, 8
      %s2252 = smul.addr %s2251, 8
      %s2253 = scalar_lea.vmem %s9, %s2252
      // Predicated region
      $region57: #{down_block_forward.1} parent=55 // pred_check
        %p2254 = pneg %p232
      $region58: #{down_block_forward.1} parent=55 // pred_check_branch
        %2256 = sbr.rel (%p2254) target = $region60
      $region59: #{down_block_forward.1} parent=55 // pred_region
        _
      $region60: #{down_block_forward.1} parent=55 // pred_fallthru
        _
    $region56: #{down_block_forward.1} parent=5 // pred_fallthru
      _
    %p2257 = scmp.le.s32.totalorder 2, %s15
    // Predicated region
    $region61: #{down_block_forward.1} parent=5 // pred_check
      %p2258 = pneg %p2257
    $region62: #{down_block_forward.1} parent=5 // pred_check_branch
      %2260 = sbr.rel (%p2258) target = $region64
    $region63: #{down_block_forward.1} parent=5 // pred_region
      %s2261 = ssub.s32 %s15, 2
      // Predicated region
      $region65: #{down_block_forward.1} parent=63 // pred_check
        %p2262 = pneg %p238
      $region66: #{down_block_forward.1} parent=63 // pred_check_branch
        %2264 = sbr.rel (%p2262) target = $region68
      $region67: #{down_block_forward.1} parent=63 // pred_region
        %p2265 = scmp.lt.s32.totalorder %s21, 1
        %s2266 = scalar_select %p2265, %s21, 1
        %s2267 = smul.addr %s2266, 8
        %s2268 = smul.addr %s2267, 8
        %s2269 = scalar_lea.vmem %s9, %s2268
      $region68: #{down_block_forward.1} parent=63 // pred_fallthru
        _
    $region64: #{down_block_forward.1} parent=5 // pred_fallthru
      _
  $region6: #{down_block_forward.1} parent=0 // loop_footer
    %s19 = sadd.s32 1, %s15
  $region7: #{down_block_forward.1} parent=0 // loop_footer_branch
    %14 = sbr.rel target = $region3
  $region8: #{down_block_forward.1} parent=0 // loop_exit
    _

</llo_original>
